<compile_context>
chip_gen: v7x
topology: tpu7x:2x2x1
jax: 0.10.0
libtpu: 0.0.40
codegen_flags: <defaults>
</compile_context>

<pallas_src>
import functools

import jax
import jax.numpy as jnp
from jax.experimental import pallas as pl
from jax.experimental.pallas import tpu as pltpu


def _fusion_kernel(w_ref, b_ref,
                   gen_ref, warp_ref, mask_ref,
                   gtop_ref, wtop_ref, mtop_ref,
                   gbot_ref, wbot_ref, mbot_ref,
                   out_ref, *, tH, W, hb):
    # w_ref:   (63,) SMEM  conv weight flattened in [kh][kw][in_c] order
    # b_ref:   (1,)  SMEM  conv bias
    # gen/warp_ref: (1, 3, tH, W) VMEM   current row tile
    # mask_ref:     (1, 1, tH, W) VMEM
    # *top_ref:     (1, C, hb, W) VMEM   block whose LAST row is image row i*tH - 1
    # *bot_ref:     (1, C, hb, W) VMEM   block whose FIRST row is image row (i+1)*tH
    # out_ref:      (1, 3, tH, W) VMEM
    i = pl.program_id(1)
    nH = pl.num_programs(1)
    f32 = jnp.float32

    # Zero the halo rows at the image top/bottom (reproduces Conv2d padding=1).
    top_valid = jnp.where(i > 0, 1.0, 0.0).astype(f32)
    bot_valid = jnp.where(i < nH - 1, 1.0, 0.0).astype(f32)

    # Channel order must match torch.cat([generated, warped, mask], dim=1).
    sources = ([(gen_ref, gtop_ref, gbot_ref, c) for c in range(3)]
               + [(warp_ref, wtop_ref, wbot_ref, c) for c in range(3)]
               + [(mask_ref, mtop_ref, mbot_ref, 0)])

    # Column-grouped partials: q[dx](y,x) = sum_{dy,c} w[dy,dx,c] * in_c(y+dy-1, x)
    q = [jnp.zeros((tH, W), f32) for _ in range(3)]

    for c, (m_ref, t_ref, bt_ref, ch) in enumerate(sources):
        main = m_ref[0, ch].astype(f32)                                   # in_c(y,   x)
        top = t_ref[0, ch, hb - 1:hb, :].astype(f32) * top_valid          # in_c(i*tH-1,   x)
        bot = bt_ref[0, ch, 0:1, :].astype(f32) * bot_valid               # in_c((i+1)*tH, x)
        if tH > 1:
            up = jnp.concatenate([top, main[:tH - 1, :]], axis=0)         # in_c(y-1, x)
            down = jnp.concatenate([main[1:, :], bot], axis=0)            # in_c(y+1, x)
        else:
            up, down = top, bot
        for dx in range(3):
            q[dx] = q[dx] + (up * w_ref[(0 * 3 + dx) * 7 + c]
                             + main * w_ref[(1 * 3 + dx) * 7 + c]
                             + down * w_ref[(2 * 3 + dx) * 7 + c])

    zcol = jnp.zeros((tH, 1), f32)
    conv = (jnp.concatenate([zcol, q[0][:, :W - 1]], axis=1)   # taps reading x-1 (kw = 0)
            + q[1]                                             # taps reading x   (kw = 1)
            + jnp.concatenate([q[2][:, 1:], zcol], axis=1)     # taps reading x+1 (kw = 2)
            + b_ref[0])
    weights = jax.nn.sigmoid(conv)                             # (tH, W)

    mw = mask_ref[0, 0].astype(f32) * weights
    inv = 1.0 - mw
    for ch in range(3):
        fused = mw * warp_ref[0, ch].astype(f32) + inv * gen_ref[0, ch].astype(f32)
        out_ref[0, ch] = fused.astype(out_ref.dtype)


def _pick_row_tile(H, W):
    # Keep each (tH, W) f32 plane <= ~512 KiB so double-buffered input/output
    # tiles plus in-kernel temporaries stay well inside the default VMEM budget.
    max_rows = max(8, (512 * 1024) // (max(W, 1) * 4))
    for t in (256, 128, 64, 32, 16, 8):
        if t <= max_rows and H % t == 0:
            return t
    return H


def adaptive_fusion_pallas(generated, warped, mask, conv_weight, conv_bias, row_tile=None):
    """generated/warped: (B,3,H,W), mask: (B,1,H,W) (NCHW, like PyTorch).
    conv_weight: (1,7,3,3) OIHW (torch layout), conv_bias: (1,)."""
    B, C, H, W = generated.shape
    assert C == 3 and warped.shape == generated.shape and mask.shape == (B, 1, H, W)

    tH = _pick_row_tile(H, W) if row_tile is None else int(row_tile)
    assert H % tH == 0, "row tile must divide H"
    assert tH % 8 == 0 or tH == H, "row tile must be a multiple of 8 (or the full height)"
    nH = H // tH                       # number of row tiles (grid dim 1)
    hb = 8 if H % 8 == 0 else tH       # halo block height (content unused when nH == 1)
    nb = tH // hb                      # tile height in halo-block units
    nhb = H // hb                      # number of halo blocks along H

    # Conv params: (out,in,kh,kw) -> flattened [kh][kw][in] to match the kernel loop.
    w_flat = jnp.transpose(conv_weight[0], (1, 2, 0)).reshape(-1).astype(jnp.float32)  # (63,)
    bias_f32 = conv_bias.reshape(-1).astype(jnp.float32)                               # (1,)

    def main_idx(b, i):
        return (b, 0, i, 0)

    def top_idx(b, i):   # block whose last row is image row i*tH - 1 (clamped at i == 0)
        return (b, 0, jnp.maximum(i * nb - 1, 0), 0)

    def bot_idx(b, i):   # block whose first row is image row (i+1)*tH (clamped at last tile)
        return (b, 0, jnp.minimum((i + 1) * nb, nhb - 1), 0)

    smem = pl.BlockSpec(memory_space=pltpu.MemorySpace.SMEM)
    in_specs = [
        smem,                                       # w_flat
        smem,                                       # bias
        pl.BlockSpec((1, 3, tH, W), main_idx),      # generated (main tile)
        pl.BlockSpec((1, 3, tH, W), main_idx),      # warped
        pl.BlockSpec((1, 1, tH, W), main_idx),      # mask
        pl.BlockSpec((1, 3, hb, W), top_idx),       # generated (top halo rows)
        pl.BlockSpec((1, 3, hb, W), top_idx),       # warped
        pl.BlockSpec((1, 1, hb, W), top_idx),       # mask
        pl.BlockSpec((1, 3, hb, W), bot_idx),       # generated (bottom halo rows)
        pl.BlockSpec((1, 3, hb, W), bot_idx),       # warped
        pl.BlockSpec((1, 1, hb, W), bot_idx),       # mask
    ]

    kernel = functools.partial(_fusion_kernel, tH=tH, W=W, hb=hb)
    return pl.pallas_call(
        kernel,
        out_shape=jax.ShapeDtypeStruct((B, 3, H, W), generated.dtype),
        grid=(B, nH),
        in_specs=in_specs,
        out_specs=pl.BlockSpec((1, 3, tH, W), main_idx),
        compiler_params=pltpu.CompilerParams(
            dimension_semantics=("parallel", "parallel")),
    )(w_flat, bias_f32,
      generated, warped, mask,        # main tiles
      generated, warped, mask,        # top halo rows
      generated, warped, mask)        # bottom halo rows


def adaptive_fusion_reference(generated, warped, mask, conv_weight, conv_bias):
    """Pure-JAX NCHW reference for correctness checking."""
    x = jnp.concatenate([generated, warped, mask], axis=1)               # (B,7,H,W)
    conv = jax.lax.conv_general_dilated(
        x, conv_weight, window_strides=(1, 1), padding="SAME",
        dimension_numbers=("NCHW", "OIHW", "NCHW"))
    weights = jax.nn.sigmoid(conv + conv_bias.reshape(1, -1, 1, 1))      # (B,1,H,W)
    mw = mask * weights
    return mw * warped + (1.0 - mw) * generated


if __name__ == "__main__":
    key = jax.random.PRNGKey(0)
    kdata, kwt, kb = jax.random.split(key, 3)

    # Deterministic conv params (nn.Conv2d(7,1,3)-style uniform init, fan_in=63).
    bound = 1.0 / jnp.sqrt(7.0 * 3.0 * 3.0)
    conv_weight = jax.random.uniform(kwt, (1, 7, 3, 3), minval=-bound, maxval=bound,
                                     dtype=jnp.float32)   # (out_c, in_c, kh, kw)
    conv_bias = jax.random.uniform(kb, (1,), minval=-bound, maxval=bound,
                                   dtype=jnp.float32)

    # Two small configs: one exercising multi-tile rows with interior halos,
    # one with auto tile selection and a non-multiple-of-128 width.
    configs = [(2, 32, 32, 16), (1, 24, 40, None)]
    for (B, H, W, row_tile) in configs:
        kc = jax.random.fold_in(kdata, H * 1000 + W)
        kg, kw_, km = jax.random.split(kc, 3)
        generated = jax.random.normal(kg, (B, 3, H, W), dtype=jnp.float32)
        warped = jax.random.normal(kw_, (B, 3, H, W), dtype=jnp.float32)
        mask = jax.random.uniform(km, (B, 1, H, W), dtype=jnp.float32)

        out = adaptive_fusion_pallas(generated, warped, mask, conv_weight, conv_bias,
                                     row_tile=row_tile)
        out = jax.block_until_ready(out)

        ref = adaptive_fusion_reference(generated, warped, mask, conv_weight, conv_bias)
        assert jnp.allclose(out, ref, atol=1e-5, rtol=1e-5), \
            f"mismatch vs reference at config {(B, H, W, row_tile)}"

    print("KERNEL_OK")
</pallas_src>

<mosaic_0001>
module attributes {stable_mosaic.version = 11 : i64} {
  func.func @_fusion_kernel(%arg0: i32, %arg1: i32, %arg2: memref<63xf32, #tpu.memory_space<smem>>, %arg3: memref<1xf32, #tpu.memory_space<smem>>, %arg4: memref<1x3x16x32xf32, #tpu.memory_space<vmem>>, %arg5: memref<1x3x16x32xf32, #tpu.memory_space<vmem>>, %arg6: memref<1x1x16x32xf32, #tpu.memory_space<vmem>>, %arg7: memref<1x3x8x32xf32, #tpu.memory_space<vmem>>, %arg8: memref<1x3x8x32xf32, #tpu.memory_space<vmem>>, %arg9: memref<1x1x8x32xf32, #tpu.memory_space<vmem>>, %arg10: memref<1x3x8x32xf32, #tpu.memory_space<vmem>>, %arg11: memref<1x3x8x32xf32, #tpu.memory_space<vmem>>, %arg12: memref<1x1x8x32xf32, #tpu.memory_space<vmem>>, %arg13: memref<1x3x16x32xf32, #tpu.memory_space<vmem>>) attributes {dimension_semantics = [#tpu.dimension_semantics<parallel>, #tpu.dimension_semantics<parallel>], iteration_bounds = array<i64: 2, 2>, scalar_prefetch = 0 : i64, scratch_operands = 0 : i64, tpu.core_type = #tpu.core_type<tc>, window_params = [{transform_indices = @transform_0, window_bounds = array<i64: 63>}, {transform_indices = @transform_1, window_bounds = array<i64: 1>}, {transform_indices = @transform_2, window_bounds = array<i64: 1, 3, 16, 32>}, {transform_indices = @transform_3, window_bounds = array<i64: 1, 3, 16, 32>}, {transform_indices = @transform_4, window_bounds = array<i64: 1, 1, 16, 32>}, {transform_indices = @transform_5, window_bounds = array<i64: 1, 3, 8, 32>}, {transform_indices = @transform_6, window_bounds = array<i64: 1, 3, 8, 32>}, {transform_indices = @transform_7, window_bounds = array<i64: 1, 1, 8, 32>}, {transform_indices = @transform_8, window_bounds = array<i64: 1, 3, 8, 32>}, {transform_indices = @transform_9, window_bounds = array<i64: 1, 3, 8, 32>}, {transform_indices = @transform_10, window_bounds = array<i64: 1, 1, 8, 32>}, {transform_indices = @transform_11, window_bounds = array<i64: 1, 3, 16, 32>}]} {
    %c0_i32 = arith.constant 0 : i32
    %0 = arith.cmpi sgt, %arg1, %c0_i32 : i32
    %cst = arith.constant 1.000000e+00 : f32
    %cst_0 = arith.constant 0.000000e+00 : f32
    %1 = arith.select %0, %cst, %cst_0 : f32
    %c1_i32 = arith.constant 1 : i32
    %2 = arith.cmpi slt, %arg1, %c1_i32 : i32
    %cst_1 = arith.constant 1.000000e+00 : f32
    %cst_2 = arith.constant 0.000000e+00 : f32
    %3 = arith.select %2, %cst_1, %cst_2 : f32
    %cst_3 = arith.constant 0.000000e+00 : f32
    %4 = vector.broadcast %cst_3 : f32 to vector<16x32xf32>
    %cst_4 = arith.constant 0.000000e+00 : f32
    %5 = vector.broadcast %cst_4 : f32 to vector<16x32xf32>
    %cst_5 = arith.constant 0.000000e+00 : f32
    %6 = vector.broadcast %cst_5 : f32 to vector<16x32xf32>
    %c0 = arith.constant 0 : index
    %c0_6 = arith.constant 0 : index
    %c0_7 = arith.constant 0 : index
    %c0_8 = arith.constant 0 : index
    %7 = vector.load %arg4[%c0, %c0_6, %c0_7, %c0_8] : memref<1x3x16x32xf32, #tpu.memory_space<vmem>>, vector<1x1x16x32xf32>
    %8 = vector.shape_cast %7 : vector<1x1x16x32xf32> to vector<16x32xf32>
    %c0_9 = arith.constant 0 : index
    %c0_10 = arith.constant 0 : index
    %c7 = arith.constant 7 : index
    %c0_11 = arith.constant 0 : index
    %9 = vector.load %arg7[%c0_9, %c0_10, %c7, %c0_11] : memref<1x3x8x32xf32, #tpu.memory_space<vmem>>, vector<1x1x1x32xf32>
    %10 = vector.shape_cast %9 : vector<1x1x1x32xf32> to vector<1x32xf32>
    %11 = vector.broadcast %1 : f32 to vector<1x32xf32>
    %12 = arith.mulf %10, %11 : vector<1x32xf32>
    %c0_12 = arith.constant 0 : index
    %c0_13 = arith.constant 0 : index
    %c0_14 = arith.constant 0 : index
    %c0_15 = arith.constant 0 : index
    %13 = vector.load %arg10[%c0_12, %c0_13, %c0_14, %c0_15] : memref<1x3x8x32xf32, #tpu.memory_space<vmem>>, vector<1x1x1x32xf32>
    %14 = vector.shape_cast %13 : vector<1x1x1x32xf32> to vector<1x32xf32>
    %15 = vector.broadcast %3 : f32 to vector<1x32xf32>
    %16 = arith.mulf %14, %15 : vector<1x32xf32>
    %17 = vector.extract_strided_slice %8 {offsets = [0, 0], sizes = [15, 32], strides = [1, 1]} : vector<16x32xf32> to vector<15x32xf32>
    %18 = tpu.concatenate %12, %17 in 0 : vector<1x32xf32>, vector<15x32xf32> -> vector<16x32xf32>
    %19 = vector.extract_strided_slice %8 {offsets = [1, 0], sizes = [15, 32], strides = [1, 1]} : vector<16x32xf32> to vector<15x32xf32>
    %20 = tpu.concatenate %19, %16 in 0 : vector<15x32xf32>, vector<1x32xf32> -> vector<16x32xf32>
    %c0_16 = arith.constant 0 : index
    %21 = memref.load %arg2[%c0_16] : memref<63xf32, #tpu.memory_space<smem>>
    %22 = vector.broadcast %21 : f32 to vector<16x32xf32>
    %23 = arith.mulf %18, %22 : vector<16x32xf32>
    %c21 = arith.constant 21 : index
    %24 = memref.load %arg2[%c21] : memref<63xf32, #tpu.memory_space<smem>>
    %25 = vector.broadcast %24 : f32 to vector<16x32xf32>
    %26 = arith.mulf %8, %25 : vector<16x32xf32>
    %27 = arith.addf %23, %26 : vector<16x32xf32>
    %c42 = arith.constant 42 : index
    %28 = memref.load %arg2[%c42] : memref<63xf32, #tpu.memory_space<smem>>
    %29 = vector.broadcast %28 : f32 to vector<16x32xf32>
    %30 = arith.mulf %20, %29 : vector<16x32xf32>
    %31 = arith.addf %27, %30 : vector<16x32xf32>
    %32 = arith.addf %4, %31 : vector<16x32xf32>
    %c7_17 = arith.constant 7 : index
    %33 = memref.load %arg2[%c7_17] : memref<63xf32, #tpu.memory_space<smem>>
    %34 = vector.broadcast %33 : f32 to vector<16x32xf32>
    %35 = arith.mulf %18, %34 : vector<16x32xf32>
    %c28 = arith.constant 28 : index
    %36 = memref.load %arg2[%c28] : memref<63xf32, #tpu.memory_space<smem>>
    %37 = vector.broadcast %36 : f32 to vector<16x32xf32>
    %38 = arith.mulf %8, %37 : vector<16x32xf32>
    %39 = arith.addf %35, %38 : vector<16x32xf32>
    %c49 = arith.constant 49 : index
    %40 = memref.load %arg2[%c49] : memref<63xf32, #tpu.memory_space<smem>>
    %41 = vector.broadcast %40 : f32 to vector<16x32xf32>
    %42 = arith.mulf %20, %41 : vector<16x32xf32>
    %43 = arith.addf %39, %42 : vector<16x32xf32>
    %44 = arith.addf %5, %43 : vector<16x32xf32>
    %c14 = arith.constant 14 : index
    %45 = memref.load %arg2[%c14] : memref<63xf32, #tpu.memory_space<smem>>
    %46 = vector.broadcast %45 : f32 to vector<16x32xf32>
    %47 = arith.mulf %18, %46 : vector<16x32xf32>
    %c35 = arith.constant 35 : index
    %48 = memref.load %arg2[%c35] : memref<63xf32, #tpu.memory_space<smem>>
    %49 = vector.broadcast %48 : f32 to vector<16x32xf32>
    %50 = arith.mulf %8, %49 : vector<16x32xf32>
    %51 = arith.addf %47, %50 : vector<16x32xf32>
    %c56 = arith.constant 56 : index
    %52 = memref.load %arg2[%c56] : memref<63xf32, #tpu.memory_space<smem>>
    %53 = vector.broadcast %52 : f32 to vector<16x32xf32>
    %54 = arith.mulf %20, %53 : vector<16x32xf32>
    %55 = arith.addf %51, %54 : vector<16x32xf32>
    %56 = arith.addf %6, %55 : vector<16x32xf32>
    %c0_18 = arith.constant 0 : index
    %c1 = arith.constant 1 : index
    %c0_19 = arith.constant 0 : index
    %c0_20 = arith.constant 0 : index
    %57 = vector.load %arg4[%c0_18, %c1, %c0_19, %c0_20] : memref<1x3x16x32xf32, #tpu.memory_space<vmem>>, vector<1x1x16x32xf32>
    %58 = vector.shape_cast %57 : vector<1x1x16x32xf32> to vector<16x32xf32>
    %c0_21 = arith.constant 0 : index
    %c1_22 = arith.constant 1 : index
    %c7_23 = arith.constant 7 : index
    %c0_24 = arith.constant 0 : index
    %59 = vector.load %arg7[%c0_21, %c1_22, %c7_23, %c0_24] : memref<1x3x8x32xf32, #tpu.memory_space<vmem>>, vector<1x1x1x32xf32>
    %60 = vector.shape_cast %59 : vector<1x1x1x32xf32> to vector<1x32xf32>
    %61 = vector.broadcast %1 : f32 to vector<1x32xf32>
    %62 = arith.mulf %60, %61 : vector<1x32xf32>
    %c0_25 = arith.constant 0 : index
    %c1_26 = arith.constant 1 : index
    %c0_27 = arith.constant 0 : index
    %c0_28 = arith.constant 0 : index
    %63 = vector.load %arg10[%c0_25, %c1_26, %c0_27, %c0_28] : memref<1x3x8x32xf32, #tpu.memory_space<vmem>>, vector<1x1x1x32xf32>
    %64 = vector.shape_cast %63 : vector<1x1x1x32xf32> to vector<1x32xf32>
    %65 = vector.broadcast %3 : f32 to vector<1x32xf32>
    %66 = arith.mulf %64, %65 : vector<1x32xf32>
    %67 = vector.extract_strided_slice %58 {offsets = [0, 0], sizes = [15, 32], strides = [1, 1]} : vector<16x32xf32> to vector<15x32xf32>
    %68 = tpu.concatenate %62, %67 in 0 : vector<1x32xf32>, vector<15x32xf32> -> vector<16x32xf32>
    %69 = vector.extract_strided_slice %58 {offsets = [1, 0], sizes = [15, 32], strides = [1, 1]} : vector<16x32xf32> to vector<15x32xf32>
    %70 = tpu.concatenate %69, %66 in 0 : vector<15x32xf32>, vector<1x32xf32> -> vector<16x32xf32>
    %c1_29 = arith.constant 1 : index
    %71 = memref.load %arg2[%c1_29] : memref<63xf32, #tpu.memory_space<smem>>
    %72 = vector.broadcast %71 : f32 to vector<16x32xf32>
    %73 = arith.mulf %68, %72 : vector<16x32xf32>
    %c22 = arith.constant 22 : index
    %74 = memref.load %arg2[%c22] : memref<63xf32, #tpu.memory_space<smem>>
    %75 = vector.broadcast %74 : f32 to vector<16x32xf32>
    %76 = arith.mulf %58, %75 : vector<16x32xf32>
    %77 = arith.addf %73, %76 : vector<16x32xf32>
    %c43 = arith.constant 43 : index
    %78 = memref.load %arg2[%c43] : memref<63xf32, #tpu.memory_space<smem>>
    %79 = vector.broadcast %78 : f32 to vector<16x32xf32>
    %80 = arith.mulf %70, %79 : vector<16x32xf32>
    %81 = arith.addf %77, %80 : vector<16x32xf32>
    %82 = arith.addf %32, %81 : vector<16x32xf32>
    %c8 = arith.constant 8 : index
    %83 = memref.load %arg2[%c8] : memref<63xf32, #tpu.memory_space<smem>>
    %84 = vector.broadcast %83 : f32 to vector<16x32xf32>
    %85 = arith.mulf %68, %84 : vector<16x32xf32>
    %c29 = arith.constant 29 : index
    %86 = memref.load %arg2[%c29] : memref<63xf32, #tpu.memory_space<smem>>
    %87 = vector.broadcast %86 : f32 to vector<16x32xf32>
    %88 = arith.mulf %58, %87 : vector<16x32xf32>
    %89 = arith.addf %85, %88 : vector<16x32xf32>
    %c50 = arith.constant 50 : index
    %90 = memref.load %arg2[%c50] : memref<63xf32, #tpu.memory_space<smem>>
    %91 = vector.broadcast %90 : f32 to vector<16x32xf32>
    %92 = arith.mulf %70, %91 : vector<16x32xf32>
    %93 = arith.addf %89, %92 : vector<16x32xf32>
    %94 = arith.addf %44, %93 : vector<16x32xf32>
    %c15 = arith.constant 15 : index
    %95 = memref.load %arg2[%c15] : memref<63xf32, #tpu.memory_space<smem>>
    %96 = vector.broadcast %95 : f32 to vector<16x32xf32>
    %97 = arith.mulf %68, %96 : vector<16x32xf32>
    %c36 = arith.constant 36 : index
    %98 = memref.load %arg2[%c36] : memref<63xf32, #tpu.memory_space<smem>>
    %99 = vector.broadcast %98 : f32 to vector<16x32xf32>
    %100 = arith.mulf %58, %99 : vector<16x32xf32>
    %101 = arith.addf %97, %100 : vector<16x32xf32>
    %c57 = arith.constant 57 : index
    %102 = memref.load %arg2[%c57] : memref<63xf32, #tpu.memory_space<smem>>
    %103 = vector.broadcast %102 : f32 to vector<16x32xf32>
    %104 = arith.mulf %70, %103 : vector<16x32xf32>
    %105 = arith.addf %101, %104 : vector<16x32xf32>
    %106 = arith.addf %56, %105 : vector<16x32xf32>
    %c0_30 = arith.constant 0 : index
    %c2 = arith.constant 2 : index
    %c0_31 = arith.constant 0 : index
    %c0_32 = arith.constant 0 : index
    %107 = vector.load %arg4[%c0_30, %c2, %c0_31, %c0_32] : memref<1x3x16x32xf32, #tpu.memory_space<vmem>>, vector<1x1x16x32xf32>
    %108 = vector.shape_cast %107 : vector<1x1x16x32xf32> to vector<16x32xf32>
    %c0_33 = arith.constant 0 : index
    %c2_34 = arith.constant 2 : index
    %c7_35 = arith.constant 7 : index
    %c0_36 = arith.constant 0 : index
    %109 = vector.load %arg7[%c0_33, %c2_34, %c7_35, %c0_36] : memref<1x3x8x32xf32, #tpu.memory_space<vmem>>, vector<1x1x1x32xf32>
    %110 = vector.shape_cast %109 : vector<1x1x1x32xf32> to vector<1x32xf32>
    %111 = vector.broadcast %1 : f32 to vector<1x32xf32>
    %112 = arith.mulf %110, %111 : vector<1x32xf32>
    %c0_37 = arith.constant 0 : index
    %c2_38 = arith.constant 2 : index
    %c0_39 = arith.constant 0 : index
    %c0_40 = arith.constant 0 : index
    %113 = vector.load %arg10[%c0_37, %c2_38, %c0_39, %c0_40] : memref<1x3x8x32xf32, #tpu.memory_space<vmem>>, vector<1x1x1x32xf32>
    %114 = vector.shape_cast %113 : vector<1x1x1x32xf32> to vector<1x32xf32>
    %115 = vector.broadcast %3 : f32 to vector<1x32xf32>
    %116 = arith.mulf %114, %115 : vector<1x32xf32>
    %117 = vector.extract_strided_slice %108 {offsets = [0, 0], sizes = [15, 32], strides = [1, 1]} : vector<16x32xf32> to vector<15x32xf32>
    %118 = tpu.concatenate %112, %117 in 0 : vector<1x32xf32>, vector<15x32xf32> -> vector<16x32xf32>
    %119 = vector.extract_strided_slice %108 {offsets = [1, 0], sizes = [15, 32], strides = [1, 1]} : vector<16x32xf32> to vector<15x32xf32>
    %120 = tpu.concatenate %119, %116 in 0 : vector<15x32xf32>, vector<1x32xf32> -> vector<16x32xf32>
    %c2_41 = arith.constant 2 : index
    %121 = memref.load %arg2[%c2_41] : memref<63xf32, #tpu.memory_space<smem>>
    %122 = vector.broadcast %121 : f32 to vector<16x32xf32>
    %123 = arith.mulf %118, %122 : vector<16x32xf32>
    %c23 = arith.constant 23 : index
    %124 = memref.load %arg2[%c23] : memref<63xf32, #tpu.memory_space<smem>>
    %125 = vector.broadcast %124 : f32 to vector<16x32xf32>
    %126 = arith.mulf %108, %125 : vector<16x32xf32>
    %127 = arith.addf %123, %126 : vector<16x32xf32>
    %c44 = arith.constant 44 : index
    %128 = memref.load %arg2[%c44] : memref<63xf32, #tpu.memory_space<smem>>
    %129 = vector.broadcast %128 : f32 to vector<16x32xf32>
    %130 = arith.mulf %120, %129 : vector<16x32xf32>
    %131 = arith.addf %127, %130 : vector<16x32xf32>
    %132 = arith.addf %82, %131 : vector<16x32xf32>
    %c9 = arith.constant 9 : index
    %133 = memref.load %arg2[%c9] : memref<63xf32, #tpu.memory_space<smem>>
    %134 = vector.broadcast %133 : f32 to vector<16x32xf32>
    %135 = arith.mulf %118, %134 : vector<16x32xf32>
    %c30 = arith.constant 30 : index
    %136 = memref.load %arg2[%c30] : memref<63xf32, #tpu.memory_space<smem>>
    %137 = vector.broadcast %136 : f32 to vector<16x32xf32>
    %138 = arith.mulf %108, %137 : vector<16x32xf32>
    %139 = arith.addf %135, %138 : vector<16x32xf32>
    %c51 = arith.constant 51 : index
    %140 = memref.load %arg2[%c51] : memref<63xf32, #tpu.memory_space<smem>>
    %141 = vector.broadcast %140 : f32 to vector<16x32xf32>
    %142 = arith.mulf %120, %141 : vector<16x32xf32>
    %143 = arith.addf %139, %142 : vector<16x32xf32>
    %144 = arith.addf %94, %143 : vector<16x32xf32>
    %c16 = arith.constant 16 : index
    %145 = memref.load %arg2[%c16] : memref<63xf32, #tpu.memory_space<smem>>
    %146 = vector.broadcast %145 : f32 to vector<16x32xf32>
    %147 = arith.mulf %118, %146 : vector<16x32xf32>
    %c37 = arith.constant 37 : index
    %148 = memref.load %arg2[%c37] : memref<63xf32, #tpu.memory_space<smem>>
    %149 = vector.broadcast %148 : f32 to vector<16x32xf32>
    %150 = arith.mulf %108, %149 : vector<16x32xf32>
    %151 = arith.addf %147, %150 : vector<16x32xf32>
    %c58 = arith.constant 58 : index
    %152 = memref.load %arg2[%c58] : memref<63xf32, #tpu.memory_space<smem>>
    %153 = vector.broadcast %152 : f32 to vector<16x32xf32>
    %154 = arith.mulf %120, %153 : vector<16x32xf32>
    %155 = arith.addf %151, %154 : vector<16x32xf32>
    %156 = arith.addf %106, %155 : vector<16x32xf32>
    %c0_42 = arith.constant 0 : index
    %c0_43 = arith.constant 0 : index
    %c0_44 = arith.constant 0 : index
    %c0_45 = arith.constant 0 : index
    %157 = vector.load %arg5[%c0_42, %c0_43, %c0_44, %c0_45] : memref<1x3x16x32xf32, #tpu.memory_space<vmem>>, vector<1x1x16x32xf32>
    %158 = vector.shape_cast %157 : vector<1x1x16x32xf32> to vector<16x32xf32>
    %c0_46 = arith.constant 0 : index
    %c0_47 = arith.constant 0 : index
    %c7_48 = arith.constant 7 : index
    %c0_49 = arith.constant 0 : index
    %159 = vector.load %arg8[%c0_46, %c0_47, %c7_48, %c0_49] : memref<1x3x8x32xf32, #tpu.memory_space<vmem>>, vector<1x1x1x32xf32>
    %160 = vector.shape_cast %159 : vector<1x1x1x32xf32> to vector<1x32xf32>
    %161 = vector.broadcast %1 : f32 to vector<1x32xf32>
    %162 = arith.mulf %160, %161 : vector<1x32xf32>
    %c0_50 = arith.constant 0 : index
    %c0_51 = arith.constant 0 : index
    %c0_52 = arith.constant 0 : index
    %c0_53 = arith.constant 0 : index
    %163 = vector.load %arg11[%c0_50, %c0_51, %c0_52, %c0_53] : memref<1x3x8x32xf32, #tpu.memory_space<vmem>>, vector<1x1x1x32xf32>
    %164 = vector.shape_cast %163 : vector<1x1x1x32xf32> to vector<1x32xf32>
    %165 = vector.broadcast %3 : f32 to vector<1x32xf32>
    %166 = arith.mulf %164, %165 : vector<1x32xf32>
    %167 = vector.extract_strided_slice %158 {offsets = [0, 0], sizes = [15, 32], strides = [1, 1]} : vector<16x32xf32> to vector<15x32xf32>
    %168 = tpu.concatenate %162, %167 in 0 : vector<1x32xf32>, vector<15x32xf32> -> vector<16x32xf32>
    %169 = vector.extract_strided_slice %158 {offsets = [1, 0], sizes = [15, 32], strides = [1, 1]} : vector<16x32xf32> to vector<15x32xf32>
    %170 = tpu.concatenate %169, %166 in 0 : vector<15x32xf32>, vector<1x32xf32> -> vector<16x32xf32>
    %c3 = arith.constant 3 : index
    %171 = memref.load %arg2[%c3] : memref<63xf32, #tpu.memory_space<smem>>
    %172 = vector.broadcast %171 : f32 to vector<16x32xf32>
    %173 = arith.mulf %168, %172 : vector<16x32xf32>
    %c24 = arith.constant 24 : index
    %174 = memref.load %arg2[%c24] : memref<63xf32, #tpu.memory_space<smem>>
    %175 = vector.broadcast %174 : f32 to vector<16x32xf32>
    %176 = arith.mulf %158, %175 : vector<16x32xf32>
    %177 = arith.addf %173, %176 : vector<16x32xf32>
    %c45 = arith.constant 45 : index
    %178 = memref.load %arg2[%c45] : memref<63xf32, #tpu.memory_space<smem>>
    %179 = vector.broadcast %178 : f32 to vector<16x32xf32>
    %180 = arith.mulf %170, %179 : vector<16x32xf32>
    %181 = arith.addf %177, %180 : vector<16x32xf32>
    %182 = arith.addf %132, %181 : vector<16x32xf32>
    %c10 = arith.constant 10 : index
    %183 = memref.load %arg2[%c10] : memref<63xf32, #tpu.memory_space<smem>>
    %184 = vector.broadcast %183 : f32 to vector<16x32xf32>
    %185 = arith.mulf %168, %184 : vector<16x32xf32>
    %c31 = arith.constant 31 : index
    %186 = memref.load %arg2[%c31] : memref<63xf32, #tpu.memory_space<smem>>
    %187 = vector.broadcast %186 : f32 to vector<16x32xf32>
    %188 = arith.mulf %158, %187 : vector<16x32xf32>
    %189 = arith.addf %185, %188 : vector<16x32xf32>
    %c52 = arith.constant 52 : index
    %190 = memref.load %arg2[%c52] : memref<63xf32, #tpu.memory_space<smem>>
    %191 = vector.broadcast %190 : f32 to vector<16x32xf32>
    %192 = arith.mulf %170, %191 : vector<16x32xf32>
    %193 = arith.addf %189, %192 : vector<16x32xf32>
    %194 = arith.addf %144, %193 : vector<16x32xf32>
    %c17 = arith.constant 17 : index
    %195 = memref.load %arg2[%c17] : memref<63xf32, #tpu.memory_space<smem>>
    %196 = vector.broadcast %195 : f32 to vector<16x32xf32>
    %197 = arith.mulf %168, %196 : vector<16x32xf32>
    %c38 = arith.constant 38 : index
    %198 = memref.load %arg2[%c38] : memref<63xf32, #tpu.memory_space<smem>>
    %199 = vector.broadcast %198 : f32 to vector<16x32xf32>
    %200 = arith.mulf %158, %199 : vector<16x32xf32>
    %201 = arith.addf %197, %200 : vector<16x32xf32>
    %c59 = arith.constant 59 : index
    %202 = memref.load %arg2[%c59] : memref<63xf32, #tpu.memory_space<smem>>
    %203 = vector.broadcast %202 : f32 to vector<16x32xf32>
    %204 = arith.mulf %170, %203 : vector<16x32xf32>
    %205 = arith.addf %201, %204 : vector<16x32xf32>
    %206 = arith.addf %156, %205 : vector<16x32xf32>
    %c0_54 = arith.constant 0 : index
    %c1_55 = arith.constant 1 : index
    %c0_56 = arith.constant 0 : index
    %c0_57 = arith.constant 0 : index
    %207 = vector.load %arg5[%c0_54, %c1_55, %c0_56, %c0_57] : memref<1x3x16x32xf32, #tpu.memory_space<vmem>>, vector<1x1x16x32xf32>
    %208 = vector.shape_cast %207 : vector<1x1x16x32xf32> to vector<16x32xf32>
    %c0_58 = arith.constant 0 : index
    %c1_59 = arith.constant 1 : index
    %c7_60 = arith.constant 7 : index
    %c0_61 = arith.constant 0 : index
    %209 = vector.load %arg8[%c0_58, %c1_59, %c7_60, %c0_61] : memref<1x3x8x32xf32, #tpu.memory_space<vmem>>, vector<1x1x1x32xf32>
    %210 = vector.shape_cast %209 : vector<1x1x1x32xf32> to vector<1x32xf32>
    %211 = vector.broadcast %1 : f32 to vector<1x32xf32>
    %212 = arith.mulf %210, %211 : vector<1x32xf32>
    %c0_62 = arith.constant 0 : index
    %c1_63 = arith.constant 1 : index
    %c0_64 = arith.constant 0 : index
    %c0_65 = arith.constant 0 : index
    %213 = vector.load %arg11[%c0_62, %c1_63, %c0_64, %c0_65] : memref<1x3x8x32xf32, #tpu.memory_space<vmem>>, vector<1x1x1x32xf32>
    %214 = vector.shape_cast %213 : vector<1x1x1x32xf32> to vector<1x32xf32>
    %215 = vector.broadcast %3 : f32 to vector<1x32xf32>
    %216 = arith.mulf %214, %215 : vector<1x32xf32>
    %217 = vector.extract_strided_slice %208 {offsets = [0, 0], sizes = [15, 32], strides = [1, 1]} : vector<16x32xf32> to vector<15x32xf32>
    %218 = tpu.concatenate %212, %217 in 0 : vector<1x32xf32>, vector<15x32xf32> -> vector<16x32xf32>
    %219 = vector.extract_strided_slice %208 {offsets = [1, 0], sizes = [15, 32], strides = [1, 1]} : vector<16x32xf32> to vector<15x32xf32>
    %220 = tpu.concatenate %219, %216 in 0 : vector<15x32xf32>, vector<1x32xf32> -> vector<16x32xf32>
    %c4 = arith.constant 4 : index
    %221 = memref.load %arg2[%c4] : memref<63xf32, #tpu.memory_space<smem>>
    %222 = vector.broadcast %221 : f32 to vector<16x32xf32>
    %223 = arith.mulf %218, %222 : vector<16x32xf32>
    %c25 = arith.constant 25 : index
    %224 = memref.load %arg2[%c25] : memref<63xf32, #tpu.memory_space<smem>>
    %225 = vector.broadcast %224 : f32 to vector<16x32xf32>
    %226 = arith.mulf %208, %225 : vector<16x32xf32>
    %227 = arith.addf %223, %226 : vector<16x32xf32>
    %c46 = arith.constant 46 : index
    %228 = memref.load %arg2[%c46] : memref<63xf32, #tpu.memory_space<smem>>
    %229 = vector.broadcast %228 : f32 to vector<16x32xf32>
    %230 = arith.mulf %220, %229 : vector<16x32xf32>
    %231 = arith.addf %227, %230 : vector<16x32xf32>
    %232 = arith.addf %182, %231 : vector<16x32xf32>
    %c11 = arith.constant 11 : index
    %233 = memref.load %arg2[%c11] : memref<63xf32, #tpu.memory_space<smem>>
    %234 = vector.broadcast %233 : f32 to vector<16x32xf32>
    %235 = arith.mulf %218, %234 : vector<16x32xf32>
    %c32 = arith.constant 32 : index
    %236 = memref.load %arg2[%c32] : memref<63xf32, #tpu.memory_space<smem>>
    %237 = vector.broadcast %236 : f32 to vector<16x32xf32>
    %238 = arith.mulf %208, %237 : vector<16x32xf32>
    %239 = arith.addf %235, %238 : vector<16x32xf32>
    %c53 = arith.constant 53 : index
    %240 = memref.load %arg2[%c53] : memref<63xf32, #tpu.memory_space<smem>>
    %241 = vector.broadcast %240 : f32 to vector<16x32xf32>
    %242 = arith.mulf %220, %241 : vector<16x32xf32>
    %243 = arith.addf %239, %242 : vector<16x32xf32>
    %244 = arith.addf %194, %243 : vector<16x32xf32>
    %c18 = arith.constant 18 : index
    %245 = memref.load %arg2[%c18] : memref<63xf32, #tpu.memory_space<smem>>
    %246 = vector.broadcast %245 : f32 to vector<16x32xf32>
    %247 = arith.mulf %218, %246 : vector<16x32xf32>
    %c39 = arith.constant 39 : index
    %248 = memref.load %arg2[%c39] : memref<63xf32, #tpu.memory_space<smem>>
    %249 = vector.broadcast %248 : f32 to vector<16x32xf32>
    %250 = arith.mulf %208, %249 : vector<16x32xf32>
    %251 = arith.addf %247, %250 : vector<16x32xf32>
    %c60 = arith.constant 60 : index
    %252 = memref.load %arg2[%c60] : memref<63xf32, #tpu.memory_space<smem>>
    %253 = vector.broadcast %252 : f32 to vector<16x32xf32>
    %254 = arith.mulf %220, %253 : vector<16x32xf32>
    %255 = arith.addf %251, %254 : vector<16x32xf32>
    %256 = arith.addf %206, %255 : vector<16x32xf32>
    %c0_66 = arith.constant 0 : index
    %c2_67 = arith.constant 2 : index
    %c0_68 = arith.constant 0 : index
    %c0_69 = arith.constant 0 : index
    %257 = vector.load %arg5[%c0_66, %c2_67, %c0_68, %c0_69] : memref<1x3x16x32xf32, #tpu.memory_space<vmem>>, vector<1x1x16x32xf32>
    %258 = vector.shape_cast %257 : vector<1x1x16x32xf32> to vector<16x32xf32>
    %c0_70 = arith.constant 0 : index
    %c2_71 = arith.constant 2 : index
    %c7_72 = arith.constant 7 : index
    %c0_73 = arith.constant 0 : index
    %259 = vector.load %arg8[%c0_70, %c2_71, %c7_72, %c0_73] : memref<1x3x8x32xf32, #tpu.memory_space<vmem>>, vector<1x1x1x32xf32>
    %260 = vector.shape_cast %259 : vector<1x1x1x32xf32> to vector<1x32xf32>
    %261 = vector.broadcast %1 : f32 to vector<1x32xf32>
    %262 = arith.mulf %260, %261 : vector<1x32xf32>
    %c0_74 = arith.constant 0 : index
    %c2_75 = arith.constant 2 : index
    %c0_76 = arith.constant 0 : index
    %c0_77 = arith.constant 0 : index
    %263 = vector.load %arg11[%c0_74, %c2_75, %c0_76, %c0_77] : memref<1x3x8x32xf32, #tpu.memory_space<vmem>>, vector<1x1x1x32xf32>
    %264 = vector.shape_cast %263 : vector<1x1x1x32xf32> to vector<1x32xf32>
    %265 = vector.broadcast %3 : f32 to vector<1x32xf32>
    %266 = arith.mulf %264, %265 : vector<1x32xf32>
    %267 = vector.extract_strided_slice %258 {offsets = [0, 0], sizes = [15, 32], strides = [1, 1]} : vector<16x32xf32> to vector<15x32xf32>
    %268 = tpu.concatenate %262, %267 in 0 : vector<1x32xf32>, vector<15x32xf32> -> vector<16x32xf32>
    %269 = vector.extract_strided_slice %258 {offsets = [1, 0], sizes = [15, 32], strides = [1, 1]} : vector<16x32xf32> to vector<15x32xf32>
    %270 = tpu.concatenate %269, %266 in 0 : vector<15x32xf32>, vector<1x32xf32> -> vector<16x32xf32>
    %c5 = arith.constant 5 : index
    %271 = memref.load %arg2[%c5] : memref<63xf32, #tpu.memory_space<smem>>
    %272 = vector.broadcast %271 : f32 to vector<16x32xf32>
    %273 = arith.mulf %268, %272 : vector<16x32xf32>
    %c26 = arith.constant 26 : index
    %274 = memref.load %arg2[%c26] : memref<63xf32, #tpu.memory_space<smem>>
    %275 = vector.broadcast %274 : f32 to vector<16x32xf32>
    %276 = arith.mulf %258, %275 : vector<16x32xf32>
    %277 = arith.addf %273, %276 : vector<16x32xf32>
    %c47 = arith.constant 47 : index
    %278 = memref.load %arg2[%c47] : memref<63xf32, #tpu.memory_space<smem>>
    %279 = vector.broadcast %278 : f32 to vector<16x32xf32>
    %280 = arith.mulf %270, %279 : vector<16x32xf32>
    %281 = arith.addf %277, %280 : vector<16x32xf32>
    %282 = arith.addf %232, %281 : vector<16x32xf32>
    %c12 = arith.constant 12 : index
    %283 = memref.load %arg2[%c12] : memref<63xf32, #tpu.memory_space<smem>>
    %284 = vector.broadcast %283 : f32 to vector<16x32xf32>
    %285 = arith.mulf %268, %284 : vector<16x32xf32>
    %c33 = arith.constant 33 : index
    %286 = memref.load %arg2[%c33] : memref<63xf32, #tpu.memory_space<smem>>
    %287 = vector.broadcast %286 : f32 to vector<16x32xf32>
    %288 = arith.mulf %258, %287 : vector<16x32xf32>
    %289 = arith.addf %285, %288 : vector<16x32xf32>
    %c54 = arith.constant 54 : index
    %290 = memref.load %arg2[%c54] : memref<63xf32, #tpu.memory_space<smem>>
    %291 = vector.broadcast %290 : f32 to vector<16x32xf32>
    %292 = arith.mulf %270, %291 : vector<16x32xf32>
    %293 = arith.addf %289, %292 : vector<16x32xf32>
    %294 = arith.addf %244, %293 : vector<16x32xf32>
    %c19 = arith.constant 19 : index
    %295 = memref.load %arg2[%c19] : memref<63xf32, #tpu.memory_space<smem>>
    %296 = vector.broadcast %295 : f32 to vector<16x32xf32>
    %297 = arith.mulf %268, %296 : vector<16x32xf32>
    %c40 = arith.constant 40 : index
    %298 = memref.load %arg2[%c40] : memref<63xf32, #tpu.memory_space<smem>>
    %299 = vector.broadcast %298 : f32 to vector<16x32xf32>
    %300 = arith.mulf %258, %299 : vector<16x32xf32>
    %301 = arith.addf %297, %300 : vector<16x32xf32>
    %c61 = arith.constant 61 : index
    %302 = memref.load %arg2[%c61] : memref<63xf32, #tpu.memory_space<smem>>
    %303 = vector.broadcast %302 : f32 to vector<16x32xf32>
    %304 = arith.mulf %270, %303 : vector<16x32xf32>
    %305 = arith.addf %301, %304 : vector<16x32xf32>
    %306 = arith.addf %256, %305 : vector<16x32xf32>
    %c0_78 = arith.constant 0 : index
    %c0_79 = arith.constant 0 : index
    %c0_80 = arith.constant 0 : index
    %c0_81 = arith.constant 0 : index
    %307 = vector.load %arg6[%c0_78, %c0_79, %c0_80, %c0_81] : memref<1x1x16x32xf32, #tpu.memory_space<vmem>>, vector<1x1x16x32xf32>
    %308 = vector.shape_cast %307 : vector<1x1x16x32xf32> to vector<16x32xf32>
    %c0_82 = arith.constant 0 : index
    %c0_83 = arith.constant 0 : index
    %c7_84 = arith.constant 7 : index
    %c0_85 = arith.constant 0 : index
    %309 = vector.load %arg9[%c0_82, %c0_83, %c7_84, %c0_85] : memref<1x1x8x32xf32, #tpu.memory_space<vmem>>, vector<1x1x1x32xf32>
    %310 = vector.shape_cast %309 : vector<1x1x1x32xf32> to vector<1x32xf32>
    %311 = vector.broadcast %1 : f32 to vector<1x32xf32>
    %312 = arith.mulf %310, %311 : vector<1x32xf32>
    %c0_86 = arith.constant 0 : index
    %c0_87 = arith.constant 0 : index
    %c0_88 = arith.constant 0 : index
    %c0_89 = arith.constant 0 : index
    %313 = vector.load %arg12[%c0_86, %c0_87, %c0_88, %c0_89] : memref<1x1x8x32xf32, #tpu.memory_space<vmem>>, vector<1x1x1x32xf32>
    %314 = vector.shape_cast %313 : vector<1x1x1x32xf32> to vector<1x32xf32>
    %315 = vector.broadcast %3 : f32 to vector<1x32xf32>
    %316 = arith.mulf %314, %315 : vector<1x32xf32>
    %317 = vector.extract_strided_slice %308 {offsets = [0, 0], sizes = [15, 32], strides = [1, 1]} : vector<16x32xf32> to vector<15x32xf32>
    %318 = tpu.concatenate %312, %317 in 0 : vector<1x32xf32>, vector<15x32xf32> -> vector<16x32xf32>
    %319 = vector.extract_strided_slice %308 {offsets = [1, 0], sizes = [15, 32], strides = [1, 1]} : vector<16x32xf32> to vector<15x32xf32>
    %320 = tpu.concatenate %319, %316 in 0 : vector<15x32xf32>, vector<1x32xf32> -> vector<16x32xf32>
    %c6 = arith.constant 6 : index
    %321 = memref.load %arg2[%c6] : memref<63xf32, #tpu.memory_space<smem>>
    %322 = vector.broadcast %321 : f32 to vector<16x32xf32>
    %323 = arith.mulf %318, %322 : vector<16x32xf32>
    %c27 = arith.constant 27 : index
    %324 = memref.load %arg2[%c27] : memref<63xf32, #tpu.memory_space<smem>>
    %325 = vector.broadcast %324 : f32 to vector<16x32xf32>
    %326 = arith.mulf %308, %325 : vector<16x32xf32>
    %327 = arith.addf %323, %326 : vector<16x32xf32>
    %c48 = arith.constant 48 : index
    %328 = memref.load %arg2[%c48] : memref<63xf32, #tpu.memory_space<smem>>
    %329 = vector.broadcast %328 : f32 to vector<16x32xf32>
    %330 = arith.mulf %320, %329 : vector<16x32xf32>
    %331 = arith.addf %327, %330 : vector<16x32xf32>
    %332 = arith.addf %282, %331 : vector<16x32xf32>
    %c13 = arith.constant 13 : index
    %333 = memref.load %arg2[%c13] : memref<63xf32, #tpu.memory_space<smem>>
    %334 = vector.broadcast %333 : f32 to vector<16x32xf32>
    %335 = arith.mulf %318, %334 : vector<16x32xf32>
    %c34 = arith.constant 34 : index
    %336 = memref.load %arg2[%c34] : memref<63xf32, #tpu.memory_space<smem>>
    %337 = vector.broadcast %336 : f32 to vector<16x32xf32>
    %338 = arith.mulf %308, %337 : vector<16x32xf32>
    %339 = arith.addf %335, %338 : vector<16x32xf32>
    %c55 = arith.constant 55 : index
    %340 = memref.load %arg2[%c55] : memref<63xf32, #tpu.memory_space<smem>>
    %341 = vector.broadcast %340 : f32 to vector<16x32xf32>
    %342 = arith.mulf %320, %341 : vector<16x32xf32>
    %343 = arith.addf %339, %342 : vector<16x32xf32>
    %344 = arith.addf %294, %343 : vector<16x32xf32>
    %c20 = arith.constant 20 : index
    %345 = memref.load %arg2[%c20] : memref<63xf32, #tpu.memory_space<smem>>
    %346 = vector.broadcast %345 : f32 to vector<16x32xf32>
    %347 = arith.mulf %318, %346 : vector<16x32xf32>
    %c41 = arith.constant 41 : index
    %348 = memref.load %arg2[%c41] : memref<63xf32, #tpu.memory_space<smem>>
    %349 = vector.broadcast %348 : f32 to vector<16x32xf32>
    %350 = arith.mulf %308, %349 : vector<16x32xf32>
    %351 = arith.addf %347, %350 : vector<16x32xf32>
    %c62 = arith.constant 62 : index
    %352 = memref.load %arg2[%c62] : memref<63xf32, #tpu.memory_space<smem>>
    %353 = vector.broadcast %352 : f32 to vector<16x32xf32>
    %354 = arith.mulf %320, %353 : vector<16x32xf32>
    %355 = arith.addf %351, %354 : vector<16x32xf32>
    %356 = arith.addf %306, %355 : vector<16x32xf32>
    %cst_90 = arith.constant 0.000000e+00 : f32
    %357 = vector.broadcast %cst_90 : f32 to vector<16x1xf32>
    %358 = vector.extract_strided_slice %332 {offsets = [0, 0], sizes = [16, 31], strides = [1, 1]} : vector<16x32xf32> to vector<16x31xf32>
    %359 = tpu.concatenate %357, %358 in 1 : vector<16x1xf32>, vector<16x31xf32> -> vector<16x32xf32>
    %360 = arith.addf %359, %344 : vector<16x32xf32>
    %361 = vector.extract_strided_slice %356 {offsets = [0, 1], sizes = [16, 31], strides = [1, 1]} : vector<16x32xf32> to vector<16x31xf32>
    %362 = tpu.concatenate %361, %357 in 1 : vector<16x31xf32>, vector<16x1xf32> -> vector<16x32xf32>
    %363 = arith.addf %360, %362 : vector<16x32xf32>
    %c0_91 = arith.constant 0 : index
    %364 = memref.load %arg3[%c0_91] : memref<1xf32, #tpu.memory_space<smem>>
    %365 = vector.broadcast %364 : f32 to vector<16x32xf32>
    %366 = arith.addf %363, %365 : vector<16x32xf32>
    %367 = arith.negf %366 : vector<16x32xf32>
    %368 = math.exp %367 : vector<16x32xf32>
    %cst_92 = arith.constant 1.000000e+00 : f32
    %369 = vector.broadcast %cst_92 : f32 to vector<16x32xf32>
    %370 = arith.addf %369, %368 : vector<16x32xf32>
    %371 = arith.divf %369, %370 : vector<16x32xf32>
    %c0_93 = arith.constant 0 : index
    %c0_94 = arith.constant 0 : index
    %c0_95 = arith.constant 0 : index
    %c0_96 = arith.constant 0 : index
    %372 = vector.load %arg6[%c0_93, %c0_94, %c0_95, %c0_96] : memref<1x1x16x32xf32, #tpu.memory_space<vmem>>, vector<1x1x16x32xf32>
    %373 = vector.shape_cast %372 : vector<1x1x16x32xf32> to vector<16x32xf32>
    %374 = arith.mulf %373, %371 : vector<16x32xf32>
    %cst_97 = arith.constant 1.000000e+00 : f32
    %375 = vector.broadcast %cst_97 : f32 to vector<16x32xf32>
    %376 = arith.subf %375, %374 : vector<16x32xf32>
    %c0_98 = arith.constant 0 : index
    %c0_99 = arith.constant 0 : index
    %c0_100 = arith.constant 0 : index
    %c0_101 = arith.constant 0 : index
    %377 = vector.load %arg5[%c0_98, %c0_99, %c0_100, %c0_101] : memref<1x3x16x32xf32, #tpu.memory_space<vmem>>, vector<1x1x16x32xf32>
    %378 = vector.shape_cast %377 : vector<1x1x16x32xf32> to vector<16x32xf32>
    %379 = arith.mulf %374, %378 : vector<16x32xf32>
    %c0_102 = arith.constant 0 : index
    %c0_103 = arith.constant 0 : index
    %c0_104 = arith.constant 0 : index
    %c0_105 = arith.constant 0 : index
    %380 = vector.load %arg4[%c0_102, %c0_103, %c0_104, %c0_105] : memref<1x3x16x32xf32, #tpu.memory_space<vmem>>, vector<1x1x16x32xf32>
    %381 = vector.shape_cast %380 : vector<1x1x16x32xf32> to vector<16x32xf32>
    %382 = arith.mulf %376, %381 : vector<16x32xf32>
    %383 = arith.addf %379, %382 : vector<16x32xf32>
    %c0_106 = arith.constant 0 : index
    %c0_107 = arith.constant 0 : index
    %c0_108 = arith.constant 0 : index
    %c0_109 = arith.constant 0 : index
    %384 = vector.load %arg13[%c0_106, %c0_107, %c0_108, %c0_109] : memref<1x3x16x32xf32, #tpu.memory_space<vmem>>, vector<1x1x16x32xf32>
    %385 = vector.shape_cast %384 : vector<1x1x16x32xf32> to vector<16x32xf32>
    %386 = vector.shape_cast %383 : vector<16x32xf32> to vector<1x1x16x32xf32>
    tpu.vector_store %arg13[%c0_106, %c0_107, %c0_108, %c0_109], %386 {strides = array<i32>} : memref<1x3x16x32xf32, #tpu.memory_space<vmem>>, vector<1x1x16x32xf32>,
    %c0_110 = arith.constant 0 : index
    %c1_111 = arith.constant 1 : index
    %c0_112 = arith.constant 0 : index
    %c0_113 = arith.constant 0 : index
    %387 = vector.load %arg5[%c0_110, %c1_111, %c0_112, %c0_113] : memref<1x3x16x32xf32, #tpu.memory_space<vmem>>, vector<1x1x16x32xf32>
    %388 = vector.shape_cast %387 : vector<1x1x16x32xf32> to vector<16x32xf32>
    %389 = arith.mulf %374, %388 : vector<16x32xf32>
    %c0_114 = arith.constant 0 : index
    %c1_115 = arith.constant 1 : index
    %c0_116 = arith.constant 0 : index
    %c0_117 = arith.constant 0 : index
    %390 = vector.load %arg4[%c0_114, %c1_115, %c0_116, %c0_117] : memref<1x3x16x32xf32, #tpu.memory_space<vmem>>, vector<1x1x16x32xf32>
    %391 = vector.shape_cast %390 : vector<1x1x16x32xf32> to vector<16x32xf32>
    %392 = arith.mulf %376, %391 : vector<16x32xf32>
    %393 = arith.addf %389, %392 : vector<16x32xf32>
    %c0_118 = arith.constant 0 : index
    %c1_119 = arith.constant 1 : index
    %c0_120 = arith.constant 0 : index
    %c0_121 = arith.constant 0 : index
    %394 = vector.load %arg13[%c0_118, %c1_119, %c0_120, %c0_121] : memref<1x3x16x32xf32, #tpu.memory_space<vmem>>, vector<1x1x16x32xf32>
    %395 = vector.shape_cast %394 : vector<1x1x16x32xf32> to vector<16x32xf32>
    %396 = vector.shape_cast %393 : vector<16x32xf32> to vector<1x1x16x32xf32>
    tpu.vector_store %arg13[%c0_118, %c1_119, %c0_120, %c0_121], %396 {strides = array<i32>} : memref<1x3x16x32xf32, #tpu.memory_space<vmem>>, vector<1x1x16x32xf32>,
    %c0_122 = arith.constant 0 : index
    %c2_123 = arith.constant 2 : index
    %c0_124 = arith.constant 0 : index
    %c0_125 = arith.constant 0 : index
    %397 = vector.load %arg5[%c0_122, %c2_123, %c0_124, %c0_125] : memref<1x3x16x32xf32, #tpu.memory_space<vmem>>, vector<1x1x16x32xf32>
    %398 = vector.shape_cast %397 : vector<1x1x16x32xf32> to vector<16x32xf32>
    %399 = arith.mulf %374, %398 : vector<16x32xf32>
    %c0_126 = arith.constant 0 : index
    %c2_127 = arith.constant 2 : index
    %c0_128 = arith.constant 0 : index
    %c0_129 = arith.constant 0 : index
    %400 = vector.load %arg4[%c0_126, %c2_127, %c0_128, %c0_129] : memref<1x3x16x32xf32, #tpu.memory_space<vmem>>, vector<1x1x16x32xf32>
    %401 = vector.shape_cast %400 : vector<1x1x16x32xf32> to vector<16x32xf32>
    %402 = arith.mulf %376, %401 : vector<16x32xf32>
    %403 = arith.addf %399, %402 : vector<16x32xf32>
    %c0_130 = arith.constant 0 : index
    %c2_131 = arith.constant 2 : index
    %c0_132 = arith.constant 0 : index
    %c0_133 = arith.constant 0 : index
    %404 = vector.load %arg13[%c0_130, %c2_131, %c0_132, %c0_133] : memref<1x3x16x32xf32, #tpu.memory_space<vmem>>, vector<1x1x16x32xf32>
    %405 = vector.shape_cast %404 : vector<1x1x16x32xf32> to vector<16x32xf32>
    %406 = vector.shape_cast %403 : vector<16x32xf32> to vector<1x1x16x32xf32>
    tpu.vector_store %arg13[%c0_130, %c2_131, %c0_132, %c0_133], %406 {strides = array<i32>} : memref<1x3x16x32xf32, #tpu.memory_space<vmem>>, vector<1x1x16x32xf32>,
    return
  }
  func.func @transform_0(%arg0: i32, %arg1: i32) -> i32 {
    %c0_i32 = arith.constant 0 : i32
    %c0_i32_0 = arith.constant 0 : i32
    return %c0_i32 : i32
  }
  func.func @transform_1(%arg0: i32, %arg1: i32) -> i32 {
    %c0_i32 = arith.constant 0 : i32
    %c0_i32_0 = arith.constant 0 : i32
    return %c0_i32 : i32
  }
  func.func @transform_2(%arg0: i32, %arg1: i32) -> (i32, i32, i32, i32) {
    %c0_i32 = arith.constant 0 : i32
    %c0_i32_0 = arith.constant 0 : i32
    %c0_i32_1 = arith.constant 0 : i32
    return %arg0, %c0_i32, %arg1, %c0_i32_0 : i32, i32, i32, i32
  }
  func.func @transform_3(%arg0: i32, %arg1: i32) -> (i32, i32, i32, i32) {
    %c0_i32 = arith.constant 0 : i32
    %c0_i32_0 = arith.constant 0 : i32
    %c0_i32_1 = arith.constant 0 : i32
    return %arg0, %c0_i32, %arg1, %c0_i32_0 : i32, i32, i32, i32
  }
  func.func @transform_4(%arg0: i32, %arg1: i32) -> (i32, i32, i32, i32) {
    %c0_i32 = arith.constant 0 : i32
    %c0_i32_0 = arith.constant 0 : i32
    %c0_i32_1 = arith.constant 0 : i32
    return %arg0, %c0_i32, %arg1, %c0_i32_0 : i32, i32, i32, i32
  }
  func.func @transform_5(%arg0: i32, %arg1: i32) -> (i32, i32, i32, i32) {
    %c2_i32 = arith.constant 2 : i32
    %0 = arith.muli %arg1, %c2_i32 : i32
    %c1_i32 = arith.constant 1 : i32
    %1 = arith.subi %0, %c1_i32 : i32
    %c0_i32 = arith.constant 0 : i32
    %2 = arith.maxsi %1, %c0_i32 : i32
    %c0_i32_0 = arith.constant 0 : i32
    %c0_i32_1 = arith.constant 0 : i32
    %c0_i32_2 = arith.constant 0 : i32
    return %arg0, %c0_i32_0, %2, %c0_i32_1 : i32, i32, i32, i32
  }
  func.func @transform_6(%arg0: i32, %arg1: i32) -> (i32, i32, i32, i32) {
    %c2_i32 = arith.constant 2 : i32
    %0 = arith.muli %arg1, %c2_i32 : i32
    %c1_i32 = arith.constant 1 : i32
    %1 = arith.subi %0, %c1_i32 : i32
    %c0_i32 = arith.constant 0 : i32
    %2 = arith.maxsi %1, %c0_i32 : i32
    %c0_i32_0 = arith.constant 0 : i32
    %c0_i32_1 = arith.constant 0 : i32
    %c0_i32_2 = arith.constant 0 : i32
    return %arg0, %c0_i32_0, %2, %c0_i32_1 : i32, i32, i32, i32
  }
  func.func @transform_7(%arg0: i32, %arg1: i32) -> (i32, i32, i32, i32) {
    %c2_i32 = arith.constant 2 : i32
    %0 = arith.muli %arg1, %c2_i32 : i32
    %c1_i32 = arith.constant 1 : i32
    %1 = arith.subi %0, %c1_i32 : i32
    %c0_i32 = arith.constant 0 : i32
    %2 = arith.maxsi %1, %c0_i32 : i32
    %c0_i32_0 = arith.constant 0 : i32
    %c0_i32_1 = arith.constant 0 : i32
    %c0_i32_2 = arith.constant 0 : i32
    return %arg0, %c0_i32_0, %2, %c0_i32_1 : i32, i32, i32, i32
  }
  func.func @transform_8(%arg0: i32, %arg1: i32) -> (i32, i32, i32, i32) {
    %c1_i32 = arith.constant 1 : i32
    %0 = arith.addi %arg1, %c1_i32 : i32
    %c2_i32 = arith.constant 2 : i32
    %1 = arith.muli %0, %c2_i32 : i32
    %c3_i32 = arith.constant 3 : i32
    %2 = arith.minsi %1, %c3_i32 : i32
    %c0_i32 = arith.constant 0 : i32
    %c0_i32_0 = arith.constant 0 : i32
    %c0_i32_1 = arith.constant 0 : i32
    return %arg0, %c0_i32, %2, %c0_i32_0 : i32, i32, i32, i32
  }
  func.func @transform_9(%arg0: i32, %arg1: i32) -> (i32, i32, i32, i32) {
    %c1_i32 = arith.constant 1 : i32
    %0 = arith.addi %arg1, %c1_i32 : i32
    %c2_i32 = arith.constant 2 : i32
    %1 = arith.muli %0, %c2_i32 : i32
    %c3_i32 = arith.constant 3 : i32
    %2 = arith.minsi %1, %c3_i32 : i32
    %c0_i32 = arith.constant 0 : i32
    %c0_i32_0 = arith.constant 0 : i32
    %c0_i32_1 = arith.constant 0 : i32
    return %arg0, %c0_i32, %2, %c0_i32_0 : i32, i32, i32, i32
  }
  func.func @transform_10(%arg0: i32, %arg1: i32) -> (i32, i32, i32, i32) {
    %c1_i32 = arith.constant 1 : i32
    %0 = arith.addi %arg1, %c1_i32 : i32
    %c2_i32 = arith.constant 2 : i32
    %1 = arith.muli %0, %c2_i32 : i32
    %c3_i32 = arith.constant 3 : i32
    %2 = arith.minsi %1, %c3_i32 : i32
    %c0_i32 = arith.constant 0 : i32
    %c0_i32_0 = arith.constant 0 : i32
    %c0_i32_1 = arith.constant 0 : i32
    return %arg0, %c0_i32, %2, %c0_i32_0 : i32, i32, i32, i32
  }
  func.func @transform_11(%arg0: i32, %arg1: i32) -> (i32, i32, i32, i32) {
    %c0_i32 = arith.constant 0 : i32
    %c0_i32_0 = arith.constant 0 : i32
    %c0_i32_1 = arith.constant 0 : i32
    return %arg0, %c0_i32, %arg1, %c0_i32_0 : i32, i32, i32, i32
  }
}

</mosaic_0001>

<llo_original>
// kernel: tpu_custom_call.1
$region0: #{tpu_custom_call.1}
  #allocation0 [shape = 'u32[]', space=smem, size = 0x4, offset = 0x4, fixed_abs, tag = 'smem constant byte address 0x4 - core index']
  #allocation1 [shape = 'u32[144,128]{1,0:T(1,128)}', space=vmem, size = 0x12000, scoped, tag = 'internal scratch']
  #allocation2 [shape = 'f32[1]{0:T(128)S(6)}', space=smem, size = 0x200, scoped, tag = 'scoped memory for tpu_custom_call.1']
  #allocation21 [shape = 's32[]', space=sflag, size = 0x4, offset = 0, fixed_abs, tag = 'sflag constant byte address 0x0 - dummy sync flag']
  #allocation23 [shape = 's32[]', space=sflag, size = 0x4, offset = 0, fixed_abs, tag = 'sflag constant byte address 0x0 - dummy sync flag']
  #allocation25 [shape = 's32[]', space=sflag, size = 0x4, offset = 0, fixed_abs, tag = 'sflag constant byte address 0x0 - dummy sync flag']
  %s0 = inlined_call_operand.vmem [shape: f32[63], index: 0, kind: input, shape index: {}]
  %s1 = inlined_call_operand.<no memory space> [shape: f32[1], index: 1, kind: input, shape index: {}]
  %s2 = inlined_call_operand.hbm [shape: f32[2,3,32,32], index: 2, kind: input, shape index: {}]
  %s3 = inlined_call_operand.hbm [shape: f32[2,3,32,32], index: 3, kind: input, shape index: {}]
  %s4 = inlined_call_operand.hbm [shape: f32[2,1,32,32], index: 4, kind: input, shape index: {}]
  %s5 = inlined_call_operand.hbm [shape: f32[2,3,32,32], index: 5, kind: input, shape index: {}]
  %s6 = inlined_call_operand.hbm [shape: f32[2,3,32,32], index: 6, kind: input, shape index: {}]
  %s7 = inlined_call_operand.hbm [shape: f32[2,1,32,32], index: 7, kind: input, shape index: {}]
  %s8 = inlined_call_operand.hbm [shape: f32[2,3,32,32], index: 8, kind: input, shape index: {}]
  %s9 = inlined_call_operand.hbm [shape: f32[2,3,32,32], index: 9, kind: input, shape index: {}]
  %s10 = inlined_call_operand.hbm [shape: f32[2,1,32,32], index: 10, kind: input, shape index: {}]
  %s11 = inlined_call_operand.hbm [shape: f32[2,3,32,32], index: 11, kind: output, shape index: {}]
  %s12 = sld [smem:[#allocation0]]
  $region117: #{tpu_custom_call.1} parent=0
    _
  %s14 = ssub.s32 1, %s12
  %s15 = scalar_select 0, %s14, %s12
  %16 = sst [smem:[#allocation2]] %s1
  $region1: #{tpu_custom_call.1} parent=0
    #allocation3 [shape = 'u8[512]{0}', space=smem, size = 0x200, scoped, tag = 'input window, operand 0, single buffered']
    #allocation4 [shape = 's32[2]{0}', space=sflag, size = 0x8, scoped, tag = 'scoped memory for tpu_custom_call.1']
    #allocation5 [shape = 's32[2]{0}', space=sflag, size = 0x8, scoped, tag = 'scoped memory for tpu_custom_call.1']
    #allocation6 [shape = 's32[2]{0}', space=sflag, size = 0x8, scoped, tag = 'scoped memory for tpu_custom_call.1']
    #allocation7 [shape = 'u8[49152]{0}', space=vmem, size = 0xc000, scoped, tag = 'input window, operand 2']
    #allocation8 [shape = 'u8[49152]{0}', space=vmem, size = 0xc000, scoped, tag = 'input window, operand 3']
    #allocation9 [shape = 's32[2]{0}', space=sflag, size = 0x8, scoped, tag = 'scoped memory for tpu_custom_call.1']
    #allocation10 [shape = 'u8[16384]{0}', space=vmem, size = 0x4000, scoped, tag = 'input window, operand 4']
    #allocation11 [shape = 'u8[24576]{0}', space=vmem, size = 0x6000, scoped, tag = 'input window, operand 5']
    #allocation12 [shape = 's32[2]{0}', space=sflag, size = 0x8, scoped, tag = 'scoped memory for tpu_custom_call.1']
    #allocation13 [shape = 'u8[24576]{0}', space=vmem, size = 0x6000, scoped, tag = 'input window, operand 6']
    #allocation14 [shape = 'u8[8192]{0}', space=vmem, size = 0x2000, scoped, tag = 'input window, operand 7']
    #allocation15 [shape = 's32[2]{0}', space=sflag, size = 0x8, scoped, tag = 'scoped memory for tpu_custom_call.1']
    #allocation16 [shape = 'u8[24576]{0}', space=vmem, size = 0x6000, scoped, tag = 'input window, operand 8']
    #allocation17 [shape = 'u8[24576]{0}', space=vmem, size = 0x6000, scoped, tag = 'input window, operand 9']
    #allocation18 [shape = 's32[2]{0}', space=sflag, size = 0x8, scoped, tag = 'scoped memory for tpu_custom_call.1']
    #allocation19 [shape = 'u8[8192]{0}', space=vmem, size = 0x2000, scoped, tag = 'input window, operand 10']
    #allocation20 [shape = 'u8[49152]{0}', space=vmem, size = 0xc000, scoped, tag = 'output window, operand 0']
    %17 = vsyncpa [#allocation6], 0
    %18 = vsyncpa [#allocation4], 0
    %s19 = scalar_lea.sflag [#allocation4], 1
    %20 = vsyncpa %s19, 0
    %21 = vsyncpa [#allocation9], 0
    %s22 = scalar_lea.sflag [#allocation9], 1
    %23 = vsyncpa %s22, 0
    %24 = vsyncpa [#allocation12], 0
    %s25 = scalar_lea.sflag [#allocation12], 1
    %26 = vsyncpa %s25, 0
    %27 = vsyncpa [#allocation15], 0
    %s28 = scalar_lea.sflag [#allocation15], 1
    %29 = vsyncpa %s28, 0
    %30 = vsyncpa [#allocation18], 0
    %s31 = scalar_lea.sflag [#allocation18], 1
    %32 = vsyncpa %s31, 0
    %33 = vsyncpa [#allocation5], 0
    %s34 = scalar_lea.sflag [#allocation5], 1
    %35 = vsyncpa %s34, 0
    loop: start=0, step=1, limit=6
    $region2: #{tpu_custom_call.1} parent=1 // loop_pre_header
      _
    $region3: #{tpu_custom_call.1} parent=1 // loop_header
      %s37 = sphi 0, %s41
      %p38 = scmp.ge.s32.totalorder %s37, 6
      %s44 = sphi 0, %s56
      %s45 = sphi 0, %s52
      %s46 = sphi 0, %s44
      %s47 = sphi 0, %s45
      %s48 = sphi 0, %s46
      %s49 = sphi 0, %s47
      %s57 = sphi 0, %s57
      %s59 = sphi 0, %s57
      %s60 = sphi 0, %s59
      %s74 = sphi 0, %s60
      %s78 = sphi 0, %s78
      %s80 = sphi 0, %s78
      %s81 = sphi 0, %s80
      %s95 = sphi 0, %s81
      %s103 = sphi 0, %s105
      %s106 = sphi 0, %s103
      %s107 = sphi 0, %s106
      %s123 = sphi 0, %s107
      %s131 = sphi 0, %s133
      %s134 = sphi 0, %s131
      %s135 = sphi 0, %s134
      %s151 = sphi 0, %s135
      %s159 = sphi 0, %s161
      %s162 = sphi 0, %s159
      %s163 = sphi 0, %s162
      %s179 = sphi 0, %s163
      %s195 = sphi 0, %s197
      %s198 = sphi 0, %s195
      %s199 = sphi 0, %s198
      %s215 = sphi 0, %s199
      %s231 = sphi 0, %s233
      %s234 = sphi 0, %s231
      %s235 = sphi 0, %s234
      %s251 = sphi 0, %s235
      %s267 = sphi 0, %s269
      %s270 = sphi 0, %s267
      %s271 = sphi 0, %s270
      %s287 = sphi 0, %s271
      %s303 = sphi 0, %s305
      %s306 = sphi 0, %s303
      %s307 = sphi 0, %s306
      %s323 = sphi 0, %s307
      %s339 = sphi 0, %s341
      %s342 = sphi 0, %s339
      %s343 = sphi 0, %s342
      %s359 = sphi 0, %s343
      %s375 = sphi 0, %s377
      %s378 = sphi 0, %s375
      %s379 = sphi 0, %s378
      %s395 = sphi 0, %s379
      %s403 = sphi 0, %s405
      %s406 = sphi 0, %s403
      %s407 = sphi 0, %s406
      %s423 = sphi 0, %s407
    $region4: #{tpu_custom_call.1} parent=1 // loop_header_branch
      %40 = sbr.rel (%p38) target = $region8
    $region5: #{tpu_custom_call.1} parent=1 // loop_body
      %s42 = ssub.s32 %s37, 1
      %s43 = ssub.s32 %s37, 2
      %s50 = sadd.s32 1, %s45
      %p51 = scmp.ge.s32.totalorder %s50, 2
      %s52 = scalar_select %p51, 0, %s50
      %s53 = sadd.s32 1, %s44
      %s54 = scalar_select %p51, %s53, %s44
      %p55 = scmp.ge.s32.totalorder %s54, 2
      %s56 = scalar_select %p55, 0, %s54
      %s58 = sadd.s32 %s57, 1
      %p61 = scmp.eq.s32.totalorder %s37, 3
      %p62 = scmp.ne.s32.totalorder %s57, %s59
      %p63 = scmp.eq.s32.totalorder %s37, 0
      %p64 = por %p62, %p63
      %p65 = scmp.ne.s32.totalorder %s57, %s59
      %p66 = scmp.eq.s32.totalorder %s42, 3
      %p67 = por %p65, %p66
      %p68 = scmp.ne.s32.totalorder %s59, %s60
      %p69 = scmp.eq.s32.totalorder %s42, 0
      %p70 = por %p68, %p69
      %p71 = scmp.ne.s32.totalorder %s59, %s60
      %p72 = scmp.eq.s32.totalorder %s43, 3
      %p73 = por %p71, %p72
      %p75 = scmp.ne.s32.totalorder %s60, %s74
      %p76 = scmp.eq.s32.totalorder %s43, 0
      %p77 = por %p75, %p76
      %s79 = sadd.s32 %s78, 1
      %p82 = scmp.eq.s32.totalorder %s37, 3
      %p83 = scmp.ne.s32.totalorder %s78, %s80
      %p84 = scmp.eq.s32.totalorder %s37, 0
      %p85 = por %p83, %p84
      %p86 = scmp.ne.s32.totalorder %s78, %s80
      %p87 = scmp.eq.s32.totalorder %s42, 3
      %p88 = por %p86, %p87
      %p89 = scmp.ne.s32.totalorder %s80, %s81
      %p90 = scmp.eq.s32.totalorder %s42, 0
      %p91 = por %p89, %p90
      %p92 = scmp.ne.s32.totalorder %s80, %s81
      %p93 = scmp.eq.s32.totalorder %s43, 3
      %p94 = por %p92, %p93
      %p96 = scmp.ne.s32.totalorder %s81, %s95
      %p97 = scmp.eq.s32.totalorder %s43, 0
      %p98 = por %p96, %p97
      %s99 = ssub.s32 %s44, %s56
      %s100 = ssub.s32 %s45, %s52
      %s101 = sor.u32 %s99, %s100
      %p102 = scmp.eq.s32.totalorder %s101, 0
      %s104 = sadd.s32 %s103, 1
      %s105 = scalar_select %p102, %s103, %s104
      %p108 = pneg %p102
      %p109 = scmp.eq.s32.totalorder %s37, 3
      %p110 = por %p108, %p109
      %p111 = scmp.ne.s32.totalorder %s103, %s106
      %p112 = scmp.eq.s32.totalorder %s37, 0
      %p113 = por %p111, %p112
      %p114 = scmp.ne.s32.totalorder %s103, %s106
      %p115 = scmp.eq.s32.totalorder %s42, 3
      %p116 = por %p114, %p115
      %p117 = scmp.ne.s32.totalorder %s106, %s107
      %p118 = scmp.eq.s32.totalorder %s42, 0
      %p119 = por %p117, %p118
      %p120 = scmp.ne.s32.totalorder %s106, %s107
      %p121 = scmp.eq.s32.totalorder %s43, 3
      %p122 = por %p120, %p121
      %p124 = scmp.ne.s32.totalorder %s107, %s123
      %p125 = scmp.eq.s32.totalorder %s43, 0
      %p126 = por %p124, %p125
      %s127 = ssub.s32 %s44, %s56
      %s128 = ssub.s32 %s45, %s52
      %s129 = sor.u32 %s127, %s128
      %p130 = scmp.eq.s32.totalorder %s129, 0
      %s132 = sadd.s32 %s131, 1
      %s133 = scalar_select %p130, %s131, %s132
      %p136 = pneg %p130
      %p137 = scmp.eq.s32.totalorder %s37, 3
      %p138 = por %p136, %p137
      %p139 = scmp.ne.s32.totalorder %s131, %s134
      %p140 = scmp.eq.s32.totalorder %s37, 0
      %p141 = por %p139, %p140
      %p142 = scmp.ne.s32.totalorder %s131, %s134
      %p143 = scmp.eq.s32.totalorder %s42, 3
      %p144 = por %p142, %p143
      %p145 = scmp.ne.s32.totalorder %s134, %s135
      %p146 = scmp.eq.s32.totalorder %s42, 0
      %p147 = por %p145, %p146
      %p148 = scmp.ne.s32.totalorder %s134, %s135
      %p149 = scmp.eq.s32.totalorder %s43, 3
      %p150 = por %p148, %p149
      %p152 = scmp.ne.s32.totalorder %s135, %s151
      %p153 = scmp.eq.s32.totalorder %s43, 0
      %p154 = por %p152, %p153
      %s155 = ssub.s32 %s44, %s56
      %s156 = ssub.s32 %s45, %s52
      %s157 = sor.u32 %s155, %s156
      %p158 = scmp.eq.s32.totalorder %s157, 0
      %s160 = sadd.s32 %s159, 1
      %s161 = scalar_select %p158, %s159, %s160
      %p164 = pneg %p158
      %p165 = scmp.eq.s32.totalorder %s37, 3
      %p166 = por %p164, %p165
      %p167 = scmp.ne.s32.totalorder %s159, %s162
      %p168 = scmp.eq.s32.totalorder %s37, 0
      %p169 = por %p167, %p168
      %p170 = scmp.ne.s32.totalorder %s159, %s162
      %p171 = scmp.eq.s32.totalorder %s42, 3
      %p172 = por %p170, %p171
      %p173 = scmp.ne.s32.totalorder %s162, %s163
      %p174 = scmp.eq.s32.totalorder %s42, 0
      %p175 = por %p173, %p174
      %p176 = scmp.ne.s32.totalorder %s162, %s163
      %p177 = scmp.eq.s32.totalorder %s43, 3
      %p178 = por %p176, %p177
      %p180 = scmp.ne.s32.totalorder %s163, %s179
      %p181 = scmp.eq.s32.totalorder %s43, 0
      %p182 = por %p180, %p181
      %s183 = smul.u32 %s45, 2
      %s184 = ssub.s32 %s183, 1
      %p185 = scmp.gt.s32.totalorder %s184, 0
      %s186 = scalar_select %p185, %s184, 0
      %s187 = smul.u32 %s52, 2
      %s188 = ssub.s32 %s187, 1
      %p189 = scmp.gt.s32.totalorder %s188, 0
      %s190 = scalar_select %p189, %s188, 0
      %s191 = ssub.s32 %s44, %s56
      %s192 = ssub.s32 %s186, %s190
      %s193 = sor.u32 %s191, %s192
      %p194 = scmp.eq.s32.totalorder %s193, 0
      %s196 = sadd.s32 %s195, 1
      %s197 = scalar_select %p194, %s195, %s196
      %p200 = pneg %p194
      %p201 = scmp.eq.s32.totalorder %s37, 3
      %p202 = por %p200, %p201
      %p203 = scmp.ne.s32.totalorder %s195, %s198
      %p204 = scmp.eq.s32.totalorder %s37, 0
      %p205 = por %p203, %p204
      %p206 = scmp.ne.s32.totalorder %s195, %s198
      %p207 = scmp.eq.s32.totalorder %s42, 3
      %p208 = por %p206, %p207
      %p209 = scmp.ne.s32.totalorder %s198, %s199
      %p210 = scmp.eq.s32.totalorder %s42, 0
      %p211 = por %p209, %p210
      %p212 = scmp.ne.s32.totalorder %s198, %s199
      %p213 = scmp.eq.s32.totalorder %s43, 3
      %p214 = por %p212, %p213
      %p216 = scmp.ne.s32.totalorder %s199, %s215
      %p217 = scmp.eq.s32.totalorder %s43, 0
      %p218 = por %p216, %p217
      %s219 = smul.u32 %s45, 2
      %s220 = ssub.s32 %s219, 1
      %p221 = scmp.gt.s32.totalorder %s220, 0
      %s222 = scalar_select %p221, %s220, 0
      %s223 = smul.u32 %s52, 2
      %s224 = ssub.s32 %s223, 1
      %p225 = scmp.gt.s32.totalorder %s224, 0
      %s226 = scalar_select %p225, %s224, 0
      %s227 = ssub.s32 %s44, %s56
      %s228 = ssub.s32 %s222, %s226
      %s229 = sor.u32 %s227, %s228
      %p230 = scmp.eq.s32.totalorder %s229, 0
      %s232 = sadd.s32 %s231, 1
      %s233 = scalar_select %p230, %s231, %s232
      %p236 = pneg %p230
      %p237 = scmp.eq.s32.totalorder %s37, 3
      %p238 = por %p236, %p237
      %p239 = scmp.ne.s32.totalorder %s231, %s234
      %p240 = scmp.eq.s32.totalorder %s37, 0
      %p241 = por %p239, %p240
      %p242 = scmp.ne.s32.totalorder %s231, %s234
      %p243 = scmp.eq.s32.totalorder %s42, 3
      %p244 = por %p242, %p243
      %p245 = scmp.ne.s32.totalorder %s234, %s235
      %p246 = scmp.eq.s32.totalorder %s42, 0
      %p247 = por %p245, %p246
      %p248 = scmp.ne.s32.totalorder %s234, %s235
      %p249 = scmp.eq.s32.totalorder %s43, 3
      %p250 = por %p248, %p249
      %p252 = scmp.ne.s32.totalorder %s235, %s251
      %p253 = scmp.eq.s32.totalorder %s43, 0
      %p254 = por %p252, %p253
      %s255 = smul.u32 %s45, 2
      %s256 = ssub.s32 %s255, 1
      %p257 = scmp.gt.s32.totalorder %s256, 0
      %s258 = scalar_select %p257, %s256, 0
      %s259 = smul.u32 %s52, 2
      %s260 = ssub.s32 %s259, 1
      %p261 = scmp.gt.s32.totalorder %s260, 0
      %s262 = scalar_select %p261, %s260, 0
      %s263 = ssub.s32 %s44, %s56
      %s264 = ssub.s32 %s258, %s262
      %s265 = sor.u32 %s263, %s264
      %p266 = scmp.eq.s32.totalorder %s265, 0
      %s268 = sadd.s32 %s267, 1
      %s269 = scalar_select %p266, %s267, %s268
      %p272 = pneg %p266
      %p273 = scmp.eq.s32.totalorder %s37, 3
      %p274 = por %p272, %p273
      %p275 = scmp.ne.s32.totalorder %s267, %s270
      %p276 = scmp.eq.s32.totalorder %s37, 0
      %p277 = por %p275, %p276
      %p278 = scmp.ne.s32.totalorder %s267, %s270
      %p279 = scmp.eq.s32.totalorder %s42, 3
      %p280 = por %p278, %p279
      %p281 = scmp.ne.s32.totalorder %s270, %s271
      %p282 = scmp.eq.s32.totalorder %s42, 0
      %p283 = por %p281, %p282
      %p284 = scmp.ne.s32.totalorder %s270, %s271
      %p285 = scmp.eq.s32.totalorder %s43, 3
      %p286 = por %p284, %p285
      %p288 = scmp.ne.s32.totalorder %s271, %s287
      %p289 = scmp.eq.s32.totalorder %s43, 0
      %p290 = por %p288, %p289
      %s291 = sadd.s32 %s45, 1
      %s292 = smul.u32 %s291, 2
      %p293 = scmp.lt.s32.totalorder %s292, 3
      %s294 = scalar_select %p293, %s292, 3
      %s295 = sadd.s32 %s52, 1
      %s296 = smul.u32 %s295, 2
      %p297 = scmp.lt.s32.totalorder %s296, 3
      %s298 = scalar_select %p297, %s296, 3
      %s299 = ssub.s32 %s44, %s56
      %s300 = ssub.s32 %s294, %s298
      %s301 = sor.u32 %s299, %s300
      %p302 = scmp.eq.s32.totalorder %s301, 0
      %s304 = sadd.s32 %s303, 1
      %s305 = scalar_select %p302, %s303, %s304
      %p308 = pneg %p302
      %p309 = scmp.eq.s32.totalorder %s37, 3
      %p310 = por %p308, %p309
      %p311 = scmp.ne.s32.totalorder %s303, %s306
      %p312 = scmp.eq.s32.totalorder %s37, 0
      %p313 = por %p311, %p312
      %p314 = scmp.ne.s32.totalorder %s303, %s306
      %p315 = scmp.eq.s32.totalorder %s42, 3
      %p316 = por %p314, %p315
      %p317 = scmp.ne.s32.totalorder %s306, %s307
      %p318 = scmp.eq.s32.totalorder %s42, 0
      %p319 = por %p317, %p318
      %p320 = scmp.ne.s32.totalorder %s306, %s307
      %p321 = scmp.eq.s32.totalorder %s43, 3
      %p322 = por %p320, %p321
      %p324 = scmp.ne.s32.totalorder %s307, %s323
      %p325 = scmp.eq.s32.totalorder %s43, 0
      %p326 = por %p324, %p325
      %s327 = sadd.s32 %s45, 1
      %s328 = smul.u32 %s327, 2
      %p329 = scmp.lt.s32.totalorder %s328, 3
      %s330 = scalar_select %p329, %s328, 3
      %s331 = sadd.s32 %s52, 1
      %s332 = smul.u32 %s331, 2
      %p333 = scmp.lt.s32.totalorder %s332, 3
      %s334 = scalar_select %p333, %s332, 3
      %s335 = ssub.s32 %s44, %s56
      %s336 = ssub.s32 %s330, %s334
      %s337 = sor.u32 %s335, %s336
      %p338 = scmp.eq.s32.totalorder %s337, 0
      %s340 = sadd.s32 %s339, 1
      %s341 = scalar_select %p338, %s339, %s340
      %p344 = pneg %p338
      %p345 = scmp.eq.s32.totalorder %s37, 3
      %p346 = por %p344, %p345
      %p347 = scmp.ne.s32.totalorder %s339, %s342
      %p348 = scmp.eq.s32.totalorder %s37, 0
      %p349 = por %p347, %p348
      %p350 = scmp.ne.s32.totalorder %s339, %s342
      %p351 = scmp.eq.s32.totalorder %s42, 3
      %p352 = por %p350, %p351
      %p353 = scmp.ne.s32.totalorder %s342, %s343
      %p354 = scmp.eq.s32.totalorder %s42, 0
      %p355 = por %p353, %p354
      %p356 = scmp.ne.s32.totalorder %s342, %s343
      %p357 = scmp.eq.s32.totalorder %s43, 3
      %p358 = por %p356, %p357
      %p360 = scmp.ne.s32.totalorder %s343, %s359
      %p361 = scmp.eq.s32.totalorder %s43, 0
      %p362 = por %p360, %p361
      %s363 = sadd.s32 %s45, 1
      %s364 = smul.u32 %s363, 2
      %p365 = scmp.lt.s32.totalorder %s364, 3
      %s366 = scalar_select %p365, %s364, 3
      %s367 = sadd.s32 %s52, 1
      %s368 = smul.u32 %s367, 2
      %p369 = scmp.lt.s32.totalorder %s368, 3
      %s370 = scalar_select %p369, %s368, 3
      %s371 = ssub.s32 %s44, %s56
      %s372 = ssub.s32 %s366, %s370
      %s373 = sor.u32 %s371, %s372
      %p374 = scmp.eq.s32.totalorder %s373, 0
      %s376 = sadd.s32 %s375, 1
      %s377 = scalar_select %p374, %s375, %s376
      %p380 = pneg %p374
      %p381 = scmp.eq.s32.totalorder %s37, 3
      %p382 = por %p380, %p381
      %p383 = scmp.ne.s32.totalorder %s375, %s378
      %p384 = scmp.eq.s32.totalorder %s37, 0
      %p385 = por %p383, %p384
      %p386 = scmp.ne.s32.totalorder %s375, %s378
      %p387 = scmp.eq.s32.totalorder %s42, 3
      %p388 = por %p386, %p387
      %p389 = scmp.ne.s32.totalorder %s378, %s379
      %p390 = scmp.eq.s32.totalorder %s42, 0
      %p391 = por %p389, %p390
      %p392 = scmp.ne.s32.totalorder %s378, %s379
      %p393 = scmp.eq.s32.totalorder %s43, 3
      %p394 = por %p392, %p393
      %p396 = scmp.ne.s32.totalorder %s379, %s395
      %p397 = scmp.eq.s32.totalorder %s43, 0
      %p398 = por %p396, %p397
      %s399 = ssub.s32 %s44, %s56
      %s400 = ssub.s32 %s45, %s52
      %s401 = sor.u32 %s399, %s400
      %p402 = scmp.eq.s32.totalorder %s401, 0
      %s404 = sadd.s32 %s403, 1
      %s405 = scalar_select %p402, %s403, %s404
      %p408 = pneg %p402
      %p409 = scmp.eq.s32.totalorder %s37, 3
      %p410 = por %p408, %p409
      %p411 = scmp.ne.s32.totalorder %s403, %s406
      %p412 = scmp.eq.s32.totalorder %s37, 0
      %p413 = por %p411, %p412
      %p414 = scmp.ne.s32.totalorder %s403, %s406
      %p415 = scmp.eq.s32.totalorder %s42, 3
      %p416 = por %p414, %p415
      %p417 = scmp.ne.s32.totalorder %s406, %s407
      %p418 = scmp.eq.s32.totalorder %s42, 0
      %p419 = por %p417, %p418
      %p420 = scmp.ne.s32.totalorder %s406, %s407
      %p421 = scmp.eq.s32.totalorder %s43, 3
      %p422 = por %p420, %p421
      %p424 = scmp.ne.s32.totalorder %s407, %s423
      %p425 = scmp.eq.s32.totalorder %s43, 0
      %p426 = por %p424, %p425
      %p427 = scmp.le.s32.totalorder 1, %s37
      %p428 = scmp.lt.s32.totalorder %s37, 5
      %p429 = pnand %p427, %p428
      %p430 = pneg %p429
      // Predicated region
      $region9: #{tpu_custom_call.1} parent=5 // pred_check
        _
      $region10: #{tpu_custom_call.1} parent=5 // pred_check_branch
        %432 = sbr.rel (%p429) target = $region12
      $region11: #{tpu_custom_call.1} parent=5 // pred_region
        %s433 = ssub.s32 %s37, 1
        // Predicated region
        $region13: #{tpu_custom_call.1} parent=11 // pred_check
          %p434 = pneg %p70
        $region14: #{tpu_custom_call.1} parent=11 // pred_check_branch
          %436 = sbr.rel (%p434) target = $region16
        $region15: #{tpu_custom_call.1} parent=11 // pred_region
          %s438 = ssub.s32 16, 16
          %439 = vsyncadd [#allocation6], %s438
          %s441 = sshll.u32 %s0, 4
          %s442 = int_to_ptr.vmem [resolvable:$true] %s441
          %444 = dma.vmem_to_smem %s442, 16, [#allocation3], [#allocation6]
        $region16: #{tpu_custom_call.1} parent=11 // pred_fallthru
          _
        // Predicated region
        $region17: #{tpu_custom_call.1} parent=11 // pred_check
          %p445 = pneg %p91
        $region18: #{tpu_custom_call.1} parent=11 // pred_check_branch
          %447 = sbr.rel (%p445) target = $region20
        $region19: #{tpu_custom_call.1} parent=11 // pred_region
          _
        $region20: #{tpu_custom_call.1} parent=11 // pred_fallthru
          _
      $region12: #{tpu_custom_call.1} parent=5 // pred_fallthru
        _
      %p448 = scmp.lt.s32.totalorder %s37, 4
      // Predicated region
      $region21: #{tpu_custom_call.1} parent=5 // pred_check
        %p449 = pneg %p448
      $region22: #{tpu_custom_call.1} parent=5 // pred_check_branch
        %451 = sbr.rel (%p449) target = $region24
      $region23: #{tpu_custom_call.1} parent=5 // pred_region
        // Predicated region
        $region25: #{tpu_custom_call.1} parent=23 // pred_check
          %p452 = pneg %p113
        $region26: #{tpu_custom_call.1} parent=23 // pred_check_branch
          %454 = sbr.rel (%p452) target = $region28
        $region27: #{tpu_custom_call.1} parent=23 // pred_region
          #allocation22 [shape = 'u32[6]{0}', space=smem, size = 0x18, scoped, tag = 'DMA stride descriptor']
          %s455 = sand.u32 %s103, 1
          %s456 = scalar_lea.sflag [#allocation4], %s455
          %s457 = sand.u32 %s103, 1
          %s458 = smul.addr %s457, 48
          %s459 = scalar_lea.vmem [#allocation7], %s458
          %s460 = smul.u32 2, %s45
          %s462 = ssub.s32 768, 768
          %463 = vsyncadd %s456, %s462
          %s464 = smul.addr %s44, 12
          %s465 = sadd.s32 %s460, %s464
          %s466 = smul.addr %s465, 128
          %s467 = scalar_lea.hbm %s2, %s466
          %s469 = sshll.u32 1, 14
          %s470 = sxor.u32 4294967295, %s469
          %s472 = sld [smem:[#allocation0]]
          %s473 = sadd.s32 2, %s472
          %s475 = sshll.u32 7, 26
          %s476 = sxor.u32 4294967295, %s475
          %s477 = sand.u32 0, %s476
          %s478 = sshll.u32 %s473, 26
          %s479 = sor.u32 %s477, %s478
          %s480 = sshll.u32 %s459, 4
          %s481 = int_to_ptr.vmem [resolvable:$true] %s480
          %487 = sst [smem:[#allocation22]] 512
          %s488 = scalar_lea.smem [#allocation22], 1
          %489 = sst [smem:[%s488]] 256
          %s490 = scalar_lea.smem [#allocation22], 2
          %491 = sst [smem:[%s490]] 2
          %s492 = scalar_lea.smem [#allocation22], 3
          %493 = sst [smem:[%s492]] 128
          %s494 = scalar_lea.smem [#allocation22], 4
          %495 = sst [smem:[%s494]] 128
          %s496 = scalar_lea.smem [#allocation22], 5
          %497 = sst [smem:[%s496]] 8
          %499 = dma.general %s467, 768, %s481, %s456, [#allocation21], [#allocation22], %s479, 0
        $region28: #{tpu_custom_call.1} parent=23 // pred_fallthru
          _
        // Predicated region
        $region29: #{tpu_custom_call.1} parent=23 // pred_check
          %p500 = pneg %p141
        $region30: #{tpu_custom_call.1} parent=23 // pred_check_branch
          %502 = sbr.rel (%p500) target = $region32
        $region31: #{tpu_custom_call.1} parent=23 // pred_region
          #allocation24 [shape = 'u32[6]{0}', space=smem, size = 0x18, scoped, tag = 'DMA stride descriptor']
          %s503 = sand.u32 %s37, 1
          %s504 = scalar_lea.sflag [#allocation9], %s503
          %s505 = sand.u32 %s131, 1
          %s506 = smul.addr %s505, 48
          %s507 = scalar_lea.vmem [#allocation8], %s506
          %s508 = smul.u32 2, %s45
          %s510 = ssub.s32 768, 768
          %511 = vsyncadd %s504, %s510
          %s512 = smul.addr %s44, 12
          %s513 = sadd.s32 %s508, %s512
          %s514 = smul.addr %s513, 128
          %s515 = scalar_lea.hbm %s3, %s514
          %s517 = sshll.u32 1, 14
          %s518 = sxor.u32 4294967295, %s517
          %s520 = sld [smem:[#allocation0]]
          %s521 = sadd.s32 2, %s520
          %s523 = sshll.u32 7, 26
          %s524 = sxor.u32 4294967295, %s523
          %s525 = sand.u32 0, %s524
          %s526 = sshll.u32 %s521, 26
          %s527 = sor.u32 %s525, %s526
          %s528 = sshll.u32 %s507, 4
          %s529 = int_to_ptr.vmem [resolvable:$true] %s528
          %535 = sst [smem:[#allocation24]] 512
          %s536 = scalar_lea.smem [#allocation24], 1
          %537 = sst [smem:[%s536]] 256
          %s538 = scalar_lea.smem [#allocation24], 2
          %539 = sst [smem:[%s538]] 2
          %s540 = scalar_lea.smem [#allocation24], 3
          %541 = sst [smem:[%s540]] 128
          %s542 = scalar_lea.smem [#allocation24], 4
          %543 = sst [smem:[%s542]] 128
          %s544 = scalar_lea.smem [#allocation24], 5
          %545 = sst [smem:[%s544]] 8
          %547 = dma.general %s515, 768, %s529, %s504, [#allocation23], [#allocation24], %s527, 0
        $region32: #{tpu_custom_call.1} parent=23 // pred_fallthru
          _
        // Predicated region
        $region33: #{tpu_custom_call.1} parent=23 // pred_check
          %p548 = pneg %p169
        $region34: #{tpu_custom_call.1} parent=23 // pred_check_branch
          %550 = sbr.rel (%p548) target = $region36
        $region35: #{tpu_custom_call.1} parent=23 // pred_region
          %s551 = sand.u32 %s37, 1
          %s552 = scalar_lea.sflag [#allocation9], %s551
          %s553 = sand.u32 %s159, 1
          %s554 = smul.addr %s553, 16
          %s555 = scalar_lea.vmem [#allocation10], %s554
          %s556 = smul.u32 2, %s45
          %s558 = ssub.s32 256, 256
          %559 = vsyncadd %s552, %s558
          %s560 = smul.addr %s44, 4
          %s561 = sadd.s32 %s556, %s560
          %s562 = smul.addr %s561, 128
          %s563 = scalar_lea.hbm %s4, %s562
          %s564 = sshll.u32 %s555, 4
          %s565 = int_to_ptr.vmem [resolvable:$true] %s564
          %570 = dma.hbm_to_vmem [thread:$0]  %s563, 256, %s565, %s552, 128, 128, 8
        $region36: #{tpu_custom_call.1} parent=23 // pred_fallthru
          _
        // Predicated region
        $region37: #{tpu_custom_call.1} parent=23 // pred_check
          %p571 = pneg %p205
        $region38: #{tpu_custom_call.1} parent=23 // pred_check_branch
          %573 = sbr.rel (%p571) target = $region40
        $region39: #{tpu_custom_call.1} parent=23 // pred_region
          %s574 = sand.u32 %s37, 1
          %s575 = scalar_lea.sflag [#allocation12], %s574
          %s576 = sand.u32 %s195, 1
          %s577 = smul.addr %s576, 24
          %s578 = scalar_lea.vmem [#allocation11], %s577
          %s579 = smul.u32 %s45, 2
          %s580 = ssub.s32 %s579, 1
          %p581 = scmp.gt.s32.totalorder %s580, 0
          %s582 = scalar_select %p581, %s580, 0
          %s584 = ssub.s32 384, 384
          %585 = vsyncadd %s575, %s584
          %s586 = smul.addr %s44, 12
          %s587 = sadd.s32 %s582, %s586
          %s588 = smul.addr %s587, 128
          %s589 = scalar_lea.hbm %s5, %s588
          %s590 = sshll.u32 %s578, 4
          %s591 = int_to_ptr.vmem [resolvable:$true] %s590
          %596 = dma.hbm_to_vmem [thread:$0]  %s589, 384, %s591, %s575, 512, 128, 8
        $region40: #{tpu_custom_call.1} parent=23 // pred_fallthru
          _
        // Predicated region
        $region41: #{tpu_custom_call.1} parent=23 // pred_check
          %p597 = pneg %p241
        $region42: #{tpu_custom_call.1} parent=23 // pred_check_branch
          %599 = sbr.rel (%p597) target = $region44
        $region43: #{tpu_custom_call.1} parent=23 // pred_region
          %s600 = sand.u32 %s37, 1
          %s601 = scalar_lea.sflag [#allocation12], %s600
          %s602 = sand.u32 %s231, 1
          %s603 = smul.addr %s602, 24
          %s604 = scalar_lea.vmem [#allocation13], %s603
          %s605 = smul.u32 %s45, 2
          %s606 = ssub.s32 %s605, 1
          %p607 = scmp.gt.s32.totalorder %s606, 0
          %s608 = scalar_select %p607, %s606, 0
          %s610 = ssub.s32 384, 384
          %611 = vsyncadd %s601, %s610
          %s612 = smul.addr %s44, 12
          %s613 = sadd.s32 %s608, %s612
          %s614 = smul.addr %s613, 128
          %s615 = scalar_lea.hbm %s6, %s614
          %s616 = sshll.u32 %s604, 4
          %s617 = int_to_ptr.vmem [resolvable:$true] %s616
          %622 = dma.hbm_to_vmem [thread:$0]  %s615, 384, %s617, %s601, 512, 128, 8
        $region44: #{tpu_custom_call.1} parent=23 // pred_fallthru
          _
        // Predicated region
        $region45: #{tpu_custom_call.1} parent=23 // pred_check
          %p623 = pneg %p277
        $region46: #{tpu_custom_call.1} parent=23 // pred_check_branch
          %625 = sbr.rel (%p623) target = $region48
        $region47: #{tpu_custom_call.1} parent=23 // pred_region
          %s626 = sand.u32 %s37, 1
          %s627 = scalar_lea.sflag [#allocation15], %s626
          %s628 = sand.u32 %s267, 1
          %s629 = smul.addr %s628, 8
          %s630 = scalar_lea.vmem [#allocation14], %s629
          %s631 = smul.u32 %s45, 2
          %s632 = ssub.s32 %s631, 1
          %p633 = scmp.gt.s32.totalorder %s632, 0
          %s634 = scalar_select %p633, %s632, 0
          %s636 = ssub.s32 128, 128
          %637 = vsyncadd %s627, %s636
          %s638 = smul.addr %s44, 4
          %s639 = sadd.s32 %s634, %s638
          %s640 = smul.addr %s639, 128
          %s641 = scalar_lea.hbm %s7, %s640
          %s643 = sshll.u32 %s630, 4
          %s644 = int_to_ptr.vmem [resolvable:$true] %s643
          %646 = dma.hbm_to_vmem [thread:$0]  %s641, 128, %s644, %s627
        $region48: #{tpu_custom_call.1} parent=23 // pred_fallthru
          _
        // Predicated region
        $region49: #{tpu_custom_call.1} parent=23 // pred_check
          %p647 = pneg %p313
        $region50: #{tpu_custom_call.1} parent=23 // pred_check_branch
          %649 = sbr.rel (%p647) target = $region52
        $region51: #{tpu_custom_call.1} parent=23 // pred_region
          %s650 = sand.u32 %s37, 1
          %s651 = scalar_lea.sflag [#allocation15], %s650
          %s652 = sand.u32 %s303, 1
          %s653 = smul.addr %s652, 24
          %s654 = scalar_lea.vmem [#allocation16], %s653
          %s655 = sadd.s32 %s45, 1
          %s656 = smul.u32 %s655, 2
          %p657 = scmp.lt.s32.totalorder %s656, 3
          %s658 = scalar_select %p657, %s656, 3
          %s660 = ssub.s32 384, 384
          %661 = vsyncadd %s651, %s660
          %s662 = smul.addr %s44, 12
          %s663 = sadd.s32 %s658, %s662
          %s664 = smul.addr %s663, 128
          %s665 = scalar_lea.hbm %s8, %s664
          %s666 = sshll.u32 %s654, 4
          %s667 = int_to_ptr.vmem [resolvable:$true] %s666
          %672 = dma.hbm_to_vmem [thread:$0]  %s665, 384, %s667, %s651, 512, 128, 8
        $region52: #{tpu_custom_call.1} parent=23 // pred_fallthru
          _
        // Predicated region
        $region53: #{tpu_custom_call.1} parent=23 // pred_check
          %p673 = pneg %p349
        $region54: #{tpu_custom_call.1} parent=23 // pred_check_branch
          %675 = sbr.rel (%p673) target = $region56
        $region55: #{tpu_custom_call.1} parent=23 // pred_region
          %s676 = sand.u32 %s37, 1
          %s677 = scalar_lea.sflag [#allocation18], %s676
          %s678 = sand.u32 %s339, 1
          %s679 = smul.addr %s678, 24
          %s680 = scalar_lea.vmem [#allocation17], %s679
          %s681 = sadd.s32 %s45, 1
          %s682 = smul.u32 %s681, 2
          %p683 = scmp.lt.s32.totalorder %s682, 3
          %s684 = scalar_select %p683, %s682, 3
          %s686 = ssub.s32 384, 384
          %687 = vsyncadd %s677, %s686
          %s688 = smul.addr %s44, 12
          %s689 = sadd.s32 %s684, %s688
          %s690 = smul.addr %s689, 128
          %s691 = scalar_lea.hbm %s9, %s690
          %s692 = sshll.u32 %s680, 4
          %s693 = int_to_ptr.vmem [resolvable:$true] %s692
          %698 = dma.hbm_to_vmem [thread:$0]  %s691, 384, %s693, %s677, 512, 128, 8
        $region56: #{tpu_custom_call.1} parent=23 // pred_fallthru
          _
        // Predicated region
        $region57: #{tpu_custom_call.1} parent=23 // pred_check
          %p699 = pneg %p385
        $region58: #{tpu_custom_call.1} parent=23 // pred_check_branch
          %701 = sbr.rel (%p699) target = $region60
        $region59: #{tpu_custom_call.1} parent=23 // pred_region
          %s702 = sand.u32 %s37, 1
          %s703 = scalar_lea.sflag [#allocation18], %s702
          %s704 = sand.u32 %s375, 1
          %s705 = smul.addr %s704, 8
          %s706 = scalar_lea.vmem [#allocation19], %s705
          %s707 = sadd.s32 %s45, 1
          %s708 = smul.u32 %s707, 2
          %p709 = scmp.lt.s32.totalorder %s708, 3
          %s710 = scalar_select %p709, %s708, 3
          %s712 = ssub.s32 128, 128
          %713 = vsyncadd %s703, %s712
          %s714 = smul.addr %s44, 4
          %s715 = sadd.s32 %s710, %s714
          %s716 = smul.addr %s715, 128
          %s717 = scalar_lea.hbm %s10, %s716
          %s719 = sshll.u32 %s706, 4
          %s720 = int_to_ptr.vmem [resolvable:$true] %s719
          %722 = dma.hbm_to_vmem [thread:$0]  %s717, 128, %s720, %s703
        $region60: #{tpu_custom_call.1} parent=23 // pred_fallthru
          _
      $region24: #{tpu_custom_call.1} parent=5 // pred_fallthru
        _
      %p723 = scmp.le.s32.totalorder 1, %s37
      %p724 = scmp.lt.s32.totalorder %s37, 5
      %p725 = pnand %p723, %p724
      %p726 = pneg %p725
      // Predicated region
      $region61: #{tpu_custom_call.1} parent=5 // pred_check
        _
      $region62: #{tpu_custom_call.1} parent=5 // pred_check_branch
        %728 = sbr.rel (%p725) target = $region64
      $region63: #{tpu_custom_call.1} parent=5 // pred_region
        %s729 = ssub.s32 %s37, 1
        // Predicated region
        $region65: #{tpu_custom_call.1} parent=63 // pred_check
          %p730 = pneg %p70
        $region66: #{tpu_custom_call.1} parent=63 // pred_check_branch
          %732 = sbr.rel (%p730) target = $region68
        $region67: #{tpu_custom_call.1} parent=63 // pred_region
          %733 = dma.done [#allocation6], 16
        $region68: #{tpu_custom_call.1} parent=63 // pred_fallthru
          _
        %s734 = sand.u32 %s106, 1
        %s735 = scalar_lea.sflag [#allocation4], %s734
        %s736 = sand.u32 %s106, 1
        %s737 = smul.addr %s736, 48
        %s738 = scalar_lea.vmem [#allocation7], %s737
        // Predicated region
        $region69: #{tpu_custom_call.1} parent=63 // pred_check
          %p739 = pneg %p119
        $region70: #{tpu_custom_call.1} parent=63 // pred_check_branch
          %741 = sbr.rel (%p739) target = $region72
        $region71: #{tpu_custom_call.1} parent=63 // pred_region
          %742 = dma.done %s735, 768
        $region72: #{tpu_custom_call.1} parent=63 // pred_fallthru
          _
        %s743 = sand.u32 %s42, 1
        %s744 = scalar_lea.sflag [#allocation9], %s743
        %s745 = sand.u32 %s134, 1
        %s746 = smul.addr %s745, 48
        %s747 = scalar_lea.vmem [#allocation8], %s746
        // Predicated region
        $region73: #{tpu_custom_call.1} parent=63 // pred_check
          %p748 = pneg %p147
        $region74: #{tpu_custom_call.1} parent=63 // pred_check_branch
          %750 = sbr.rel (%p748) target = $region76
        $region75: #{tpu_custom_call.1} parent=63 // pred_region
          %751 = dma.done %s744, 768
        $region76: #{tpu_custom_call.1} parent=63 // pred_fallthru
          _
        %s752 = sand.u32 %s42, 1
        %s753 = scalar_lea.sflag [#allocation9], %s752
        %s754 = sand.u32 %s162, 1
        %s755 = smul.addr %s754, 16
        %s756 = scalar_lea.vmem [#allocation10], %s755
        // Predicated region
        $region77: #{tpu_custom_call.1} parent=63 // pred_check
          %p757 = pneg %p175
        $region78: #{tpu_custom_call.1} parent=63 // pred_check_branch
          %759 = sbr.rel (%p757) target = $region80
        $region79: #{tpu_custom_call.1} parent=63 // pred_region
          %760 = dma.done %s753, 256
        $region80: #{tpu_custom_call.1} parent=63 // pred_fallthru
          _
        %s761 = sand.u32 %s42, 1
        %s762 = scalar_lea.sflag [#allocation12], %s761
        %s763 = sand.u32 %s198, 1
        %s764 = smul.addr %s763, 24
        %s765 = scalar_lea.vmem [#allocation11], %s764
        // Predicated region
        $region81: #{tpu_custom_call.1} parent=63 // pred_check
          %p766 = pneg %p211
        $region82: #{tpu_custom_call.1} parent=63 // pred_check_branch
          %768 = sbr.rel (%p766) target = $region84
        $region83: #{tpu_custom_call.1} parent=63 // pred_region
          %769 = dma.done %s762, 384
        $region84: #{tpu_custom_call.1} parent=63 // pred_fallthru
          _
        %s770 = sand.u32 %s42, 1
        %s771 = scalar_lea.sflag [#allocation12], %s770
        %s772 = sand.u32 %s234, 1
        %s773 = smul.addr %s772, 24
        %s774 = scalar_lea.vmem [#allocation13], %s773
        // Predicated region
        $region85: #{tpu_custom_call.1} parent=63 // pred_check
          %p775 = pneg %p247
        $region86: #{tpu_custom_call.1} parent=63 // pred_check_branch
          %777 = sbr.rel (%p775) target = $region88
        $region87: #{tpu_custom_call.1} parent=63 // pred_region
          %778 = dma.done %s771, 384
        $region88: #{tpu_custom_call.1} parent=63 // pred_fallthru
          _
        %s779 = sand.u32 %s42, 1
        %s780 = scalar_lea.sflag [#allocation15], %s779
        %s781 = sand.u32 %s270, 1
        %s782 = smul.addr %s781, 8
        %s783 = scalar_lea.vmem [#allocation14], %s782
        // Predicated region
        $region89: #{tpu_custom_call.1} parent=63 // pred_check
          %p784 = pneg %p283
        $region90: #{tpu_custom_call.1} parent=63 // pred_check_branch
          %786 = sbr.rel (%p784) target = $region92
        $region91: #{tpu_custom_call.1} parent=63 // pred_region
          %787 = dma.done %s780, 128
        $region92: #{tpu_custom_call.1} parent=63 // pred_fallthru
          _
        %s788 = sand.u32 %s42, 1
        %s789 = scalar_lea.sflag [#allocation15], %s788
        %s790 = sand.u32 %s306, 1
        %s791 = smul.addr %s790, 24
        %s792 = scalar_lea.vmem [#allocation16], %s791
        // Predicated region
        $region93: #{tpu_custom_call.1} parent=63 // pred_check
          %p793 = pneg %p319
        $region94: #{tpu_custom_call.1} parent=63 // pred_check_branch
          %795 = sbr.rel (%p793) target = $region96
        $region95: #{tpu_custom_call.1} parent=63 // pred_region
          %796 = dma.done %s789, 384
        $region96: #{tpu_custom_call.1} parent=63 // pred_fallthru
          _
        %s797 = sand.u32 %s42, 1
        %s798 = scalar_lea.sflag [#allocation18], %s797
        %s799 = sand.u32 %s342, 1
        %s800 = smul.addr %s799, 24
        %s801 = scalar_lea.vmem [#allocation17], %s800
        // Predicated region
        $region97: #{tpu_custom_call.1} parent=63 // pred_check
          %p802 = pneg %p355
        $region98: #{tpu_custom_call.1} parent=63 // pred_check_branch
          %804 = sbr.rel (%p802) target = $region100
        $region99: #{tpu_custom_call.1} parent=63 // pred_region
          %805 = dma.done %s798, 384
        $region100: #{tpu_custom_call.1} parent=63 // pred_fallthru
          _
        %s806 = sand.u32 %s42, 1
        %s807 = scalar_lea.sflag [#allocation18], %s806
        %s808 = sand.u32 %s378, 1
        %s809 = smul.addr %s808, 8
        %s810 = scalar_lea.vmem [#allocation19], %s809
        // Predicated region
        $region101: #{tpu_custom_call.1} parent=63 // pred_check
          %p811 = pneg %p391
        $region102: #{tpu_custom_call.1} parent=63 // pred_check_branch
          %813 = sbr.rel (%p811) target = $region104
        $region103: #{tpu_custom_call.1} parent=63 // pred_region
          %814 = dma.done %s807, 128
        $region104: #{tpu_custom_call.1} parent=63 // pred_fallthru
          _
        %815 = sfence
        %p816 = pneg %p70
        %p817 = pneg %p67
        %p818 = pneg %p91
        %p819 = pneg %p88
        %s820 = sand.u32 %s106, 1
        %s821 = scalar_lea.sflag [#allocation4], %s820
        %s822 = sand.u32 %s106, 1
        %s823 = smul.addr %s822, 48
        %s824 = scalar_lea.vmem [#allocation7], %s823
        %p825 = pneg %p119
        %p826 = pneg %p116
        %s827 = sand.u32 %s42, 1
        %s828 = scalar_lea.sflag [#allocation9], %s827
        %s829 = sand.u32 %s134, 1
        %s830 = smul.addr %s829, 48
        %s831 = scalar_lea.vmem [#allocation8], %s830
        %p832 = pneg %p147
        %p833 = pneg %p144
        %s834 = sand.u32 %s42, 1
        %s835 = scalar_lea.sflag [#allocation9], %s834
        %s836 = sand.u32 %s162, 1
        %s837 = smul.addr %s836, 16
        %s838 = scalar_lea.vmem [#allocation10], %s837
        %p839 = pneg %p175
        %p840 = pneg %p172
        %s841 = sand.u32 %s42, 1
        %s842 = scalar_lea.sflag [#allocation12], %s841
        %s843 = sand.u32 %s198, 1
        %s844 = smul.addr %s843, 24
        %s845 = scalar_lea.vmem [#allocation11], %s844
        %p846 = pneg %p211
        %p847 = pneg %p208
        %s848 = sand.u32 %s42, 1
        %s849 = scalar_lea.sflag [#allocation12], %s848
        %s850 = sand.u32 %s234, 1
        %s851 = smul.addr %s850, 24
        %s852 = scalar_lea.vmem [#allocation13], %s851
        %p853 = pneg %p247
        %p854 = pneg %p244
        %s855 = sand.u32 %s42, 1
        %s856 = scalar_lea.sflag [#allocation15], %s855
        %s857 = sand.u32 %s270, 1
        %s858 = smul.addr %s857, 8
        %s859 = scalar_lea.vmem [#allocation14], %s858
        %p860 = pneg %p283
        %p861 = pneg %p280
        %s862 = sand.u32 %s42, 1
        %s863 = scalar_lea.sflag [#allocation15], %s862
        %s864 = sand.u32 %s306, 1
        %s865 = smul.addr %s864, 24
        %s866 = scalar_lea.vmem [#allocation16], %s865
        %p867 = pneg %p319
        %p868 = pneg %p316
        %s869 = sand.u32 %s42, 1
        %s870 = scalar_lea.sflag [#allocation18], %s869
        %s871 = sand.u32 %s342, 1
        %s872 = smul.addr %s871, 24
        %s873 = scalar_lea.vmem [#allocation17], %s872
        %p874 = pneg %p355
        %p875 = pneg %p352
        %s876 = sand.u32 %s42, 1
        %s877 = scalar_lea.sflag [#allocation18], %s876
        %s878 = sand.u32 %s378, 1
        %s879 = smul.addr %s878, 8
        %s880 = scalar_lea.vmem [#allocation19], %s879
        %p881 = pneg %p391
        %p882 = pneg %p388
        %p883 = pneg %p419
        %p884 = pneg %p416
        %s885 = sand.u32 %s406, 1
        %s886 = scalar_lea.sflag [#allocation5], %s885
        %s887 = sand.u32 %s406, 1
        %s888 = smul.addr %s887, 48
        %s889 = scalar_lea.vmem [#allocation20], %s888
        %s890 = smul.u32 2, %s47
        %s891 = smul.u32 2, %s47
        %s892 = smul.u32 2, %s47
        %s893 = smul.u32 %s47, 2
        %s894 = ssub.s32 %s893, 1
        %p895 = scmp.gt.s32.totalorder %s894, 0
        %s896 = scalar_select %p895, %s894, 0
        %s897 = smul.u32 %s47, 2
        %s898 = ssub.s32 %s897, 1
        %p899 = scmp.gt.s32.totalorder %s898, 0
        %s900 = scalar_select %p899, %s898, 0
        %s901 = smul.u32 %s47, 2
        %s902 = ssub.s32 %s901, 1
        %p903 = scmp.gt.s32.totalorder %s902, 0
        %s904 = scalar_select %p903, %s902, 0
        %s905 = sadd.s32 %s47, 1
        %s906 = smul.u32 %s905, 2
        %p907 = scmp.lt.s32.totalorder %s906, 3
        %s908 = scalar_select %p907, %s906, 3
        %s909 = sadd.s32 %s47, 1
        %s910 = smul.u32 %s909, 2
        %p911 = scmp.lt.s32.totalorder %s910, 3
        %s912 = scalar_select %p911, %s910, 3
        %s913 = sadd.s32 %s47, 1
        %s914 = smul.u32 %s913, 2
        %p915 = scmp.lt.s32.totalorder %s914, 3
        %s916 = scalar_select %p915, %s914, 3
        %s917 = smul.u32 2, %s47
        %p918 = scmp.gt.s32.totalorder %s47, 0
        %s919 = scalar_select %p918, 1.0, 0.0
        %p920 = scmp.lt.s32.totalorder %s47, 1
        %s921 = scalar_select %p920, 1.0, 0.0
        %v922 = vld [vmem:[%s738] sm:$0xff]
        %v923 = vld [vmem:[%s738 + $0x8] sm:$0xff]
        %v924 = vld [vmem:[%s765 + $0x7] sm:$0x1]
        %v925 = vstv %s919
        %v926 = vmul.f32 %v924, %v925
        %v927 = vld [vmem:[%s792] sm:$0x1]
        %v928 = vstv %s921
        %v929 = vmul.f32 %v927, %v928
        %vm932 = vcmask 1040384
        %v933 = vrot.slane %v922, 7
        %v934 = vrot.slane %v923, 7
        %v935 = vsel %vm932, %v933, %v934
        %v938 = vsel %vm932, %v926, %v933
        %vm939 = vcmask 1046528
        %v940 = vrot.slane %v922, 1
        %v941 = vrot.slane %v923, 1
        %v942 = vsel %vm939, %v940, %v941
        %v946 = vrot.slane %v929, 1
        %v948 = vsel %vm939, %v941, %v946
        %s949 = sld [smem:[#allocation3]]
        %v950 = vstv %s949
        %v951 = vmul.f32 %v938, %v950
        %v952 = vmul.f32 %v935, %v950
        %s953 = sld [smem:[#allocation3 + $0x15]]
        %v954 = vstv %s953
        %v955 = vmul.f32 %v922, %v954
        %v956 = vmul.f32 %v923, %v954
        %v957 = vadd.f32 %v951, %v955
        %v958 = vadd.f32 %v952, %v956
        %s959 = sld [smem:[#allocation3 + $0x2a]]
        %v960 = vstv %s959
        %v961 = vmul.f32 %v942, %v960
        %v962 = vmul.f32 %v948, %v960
        %v963 = vadd.f32 %v957, %v961
        %v964 = vadd.f32 %v958, %v962
        %v965 = vadd.f32 %v963, 0.0
        %v966 = vadd.f32 %v964, 0.0
        %s967 = sld [smem:[#allocation3 + $0x7]]
        %v968 = vstv %s967
        %v969 = vmul.f32 %v938, %v968
        %v970 = vmul.f32 %v935, %v968
        %s971 = sld [smem:[#allocation3 + $0x1c]]
        %v972 = vstv %s971
        %v973 = vmul.f32 %v922, %v972
        %v974 = vmul.f32 %v923, %v972
        %v975 = vadd.f32 %v969, %v973
        %v976 = vadd.f32 %v970, %v974
        %s977 = sld [smem:[#allocation3 + $0x31]]
        %v978 = vstv %s977
        %v979 = vmul.f32 %v942, %v978
        %v980 = vmul.f32 %v948, %v978
        %v981 = vadd.f32 %v975, %v979
        %v982 = vadd.f32 %v976, %v980
        %v983 = vadd.f32 %v981, 0.0
        %v984 = vadd.f32 %v982, 0.0
        %s985 = sld [smem:[#allocation3 + $0xe]]
        %v986 = vstv %s985
        %v987 = vmul.f32 %v938, %v986
        %v988 = vmul.f32 %v935, %v986
        %s989 = sld [smem:[#allocation3 + $0x23]]
        %v990 = vstv %s989
        %v991 = vmul.f32 %v922, %v990
        %v992 = vmul.f32 %v923, %v990
        %v993 = vadd.f32 %v987, %v991
        %v994 = vadd.f32 %v988, %v992
        %s995 = sld [smem:[#allocation3 + $0x38]]
        %v996 = vstv %s995
        %v997 = vmul.f32 %v942, %v996
        %v998 = vmul.f32 %v948, %v996
        %v999 = vadd.f32 %v993, %v997
        %v1000 = vadd.f32 %v994, %v998
        %v1001 = vadd.f32 %v999, 0.0
        %v1002 = vadd.f32 %v1000, 0.0
        %s1003 = scalar_lea.vmem %s738, 16 [#allocation7]
        %v1004 = vld [vmem:[%s1003] sm:$0xff]
        %v1005 = vld [vmem:[%s1003 + $0x8] sm:$0xff]
        %s1006 = scalar_lea.vmem %s765, 8 [#allocation11]
        %v1007 = vld [vmem:[%s1006 + $0x7] sm:$0x1]
        %v1008 = vmul.f32 %v1007, %v925
        %s1009 = scalar_lea.vmem %s792, 8 [#allocation16]
        %v1010 = vld [vmem:[%s1009] sm:$0x1]
        %v1011 = vmul.f32 %v1010, %v928
        %v1014 = vrot.slane %v1004, 7
        %v1015 = vrot.slane %v1005, 7
        %v1016 = vsel %vm932, %v1014, %v1015
        %v1019 = vsel %vm932, %v1008, %v1014
        %v1020 = vrot.slane %v1004, 1
        %v1021 = vrot.slane %v1005, 1
        %v1022 = vsel %vm939, %v1020, %v1021
        %v1026 = vrot.slane %v1011, 1
        %v1028 = vsel %vm939, %v1021, %v1026
        %s1029 = sld [smem:[#allocation3 + $0x1]]
        %v1030 = vstv %s1029
        %v1031 = vmul.f32 %v1019, %v1030
        %v1032 = vmul.f32 %v1016, %v1030
        %s1033 = sld [smem:[#allocation3 + $0x16]]
        %v1034 = vstv %s1033
        %v1035 = vmul.f32 %v1004, %v1034
        %v1036 = vmul.f32 %v1005, %v1034
        %v1037 = vadd.f32 %v1031, %v1035
        %v1038 = vadd.f32 %v1032, %v1036
        %s1039 = sld [smem:[#allocation3 + $0x2b]]
        %v1040 = vstv %s1039
        %v1041 = vmul.f32 %v1022, %v1040
        %v1042 = vmul.f32 %v1028, %v1040
        %v1043 = vadd.f32 %v1037, %v1041
        %v1044 = vadd.f32 %v1038, %v1042
        %v1045 = vadd.f32 %v965, %v1043
        %v1046 = vadd.f32 %v966, %v1044
        %s1047 = sld [smem:[#allocation3 + $0x8]]
        %v1048 = vstv %s1047
        %v1049 = vmul.f32 %v1019, %v1048
        %v1050 = vmul.f32 %v1016, %v1048
        %s1051 = sld [smem:[#allocation3 + $0x1d]]
        %v1052 = vstv %s1051
        %v1053 = vmul.f32 %v1004, %v1052
        %v1054 = vmul.f32 %v1005, %v1052
        %v1055 = vadd.f32 %v1049, %v1053
        %v1056 = vadd.f32 %v1050, %v1054
        %s1057 = sld [smem:[#allocation3 + $0x32]]
        %v1058 = vstv %s1057
        %v1059 = vmul.f32 %v1022, %v1058
        %v1060 = vmul.f32 %v1028, %v1058
        %v1061 = vadd.f32 %v1055, %v1059
        %v1062 = vadd.f32 %v1056, %v1060
        %v1063 = vadd.f32 %v983, %v1061
        %v1064 = vadd.f32 %v984, %v1062
        %s1065 = sld [smem:[#allocation3 + $0xf]]
        %v1066 = vstv %s1065
        %v1067 = vmul.f32 %v1019, %v1066
        %v1068 = vmul.f32 %v1016, %v1066
        %s1069 = sld [smem:[#allocation3 + $0x24]]
        %v1070 = vstv %s1069
        %v1071 = vmul.f32 %v1004, %v1070
        %v1072 = vmul.f32 %v1005, %v1070
        %v1073 = vadd.f32 %v1067, %v1071
        %v1074 = vadd.f32 %v1068, %v1072
        %s1075 = sld [smem:[#allocation3 + $0x39]]
        %v1076 = vstv %s1075
        %v1077 = vmul.f32 %v1022, %v1076
        %v1078 = vmul.f32 %v1028, %v1076
        %v1079 = vadd.f32 %v1073, %v1077
        %v1080 = vadd.f32 %v1074, %v1078
        %v1081 = vadd.f32 %v1001, %v1079
        %v1082 = vadd.f32 %v1002, %v1080
        %s1083 = scalar_lea.vmem %s738, 32 [#allocation7]
        %v1084 = vld [vmem:[%s1083] sm:$0xff]
        %v1085 = vld [vmem:[%s1083 + $0x8] sm:$0xff]
        %s1086 = scalar_lea.vmem %s765, 16 [#allocation11]
        %v1087 = vld [vmem:[%s1086 + $0x7] sm:$0x1]
        %v1088 = vmul.f32 %v1087, %v925
        %s1089 = scalar_lea.vmem %s792, 16 [#allocation16]
        %v1090 = vld [vmem:[%s1089] sm:$0x1]
        %v1091 = vmul.f32 %v1090, %v928
        %v1094 = vrot.slane %v1084, 7
        %v1095 = vrot.slane %v1085, 7
        %v1096 = vsel %vm932, %v1094, %v1095
        %v1099 = vsel %vm932, %v1088, %v1094
        %v1100 = vrot.slane %v1084, 1
        %v1101 = vrot.slane %v1085, 1
        %v1102 = vsel %vm939, %v1100, %v1101
        %v1106 = vrot.slane %v1091, 1
        %v1108 = vsel %vm939, %v1101, %v1106
        %s1109 = sld [smem:[#allocation3 + $0x2]]
        %v1110 = vstv %s1109
        %v1111 = vmul.f32 %v1099, %v1110
        %v1112 = vmul.f32 %v1096, %v1110
        %s1113 = sld [smem:[#allocation3 + $0x17]]
        %v1114 = vstv %s1113
        %v1115 = vmul.f32 %v1084, %v1114
        %v1116 = vmul.f32 %v1085, %v1114
        %v1117 = vadd.f32 %v1111, %v1115
        %v1118 = vadd.f32 %v1112, %v1116
        %s1119 = sld [smem:[#allocation3 + $0x2c]]
        %v1120 = vstv %s1119
        %v1121 = vmul.f32 %v1102, %v1120
        %v1122 = vmul.f32 %v1108, %v1120
        %v1123 = vadd.f32 %v1117, %v1121
        %v1124 = vadd.f32 %v1118, %v1122
        %v1125 = vadd.f32 %v1045, %v1123
        %v1126 = vadd.f32 %v1046, %v1124
        %s1127 = sld [smem:[#allocation3 + $0x9]]
        %v1128 = vstv %s1127
        %v1129 = vmul.f32 %v1099, %v1128
        %v1130 = vmul.f32 %v1096, %v1128
        %s1131 = sld [smem:[#allocation3 + $0x1e]]
        %v1132 = vstv %s1131
        %v1133 = vmul.f32 %v1084, %v1132
        %v1134 = vmul.f32 %v1085, %v1132
        %v1135 = vadd.f32 %v1129, %v1133
        %v1136 = vadd.f32 %v1130, %v1134
        %s1137 = sld [smem:[#allocation3 + $0x33]]
        %v1138 = vstv %s1137
        %v1139 = vmul.f32 %v1102, %v1138
        %v1140 = vmul.f32 %v1108, %v1138
        %v1141 = vadd.f32 %v1135, %v1139
        %v1142 = vadd.f32 %v1136, %v1140
        %v1143 = vadd.f32 %v1063, %v1141
        %v1144 = vadd.f32 %v1064, %v1142
        %s1145 = sld [smem:[#allocation3 + $0x10]]
        %v1146 = vstv %s1145
        %v1147 = vmul.f32 %v1099, %v1146
        %v1148 = vmul.f32 %v1096, %v1146
        %s1149 = sld [smem:[#allocation3 + $0x25]]
        %v1150 = vstv %s1149
        %v1151 = vmul.f32 %v1084, %v1150
        %v1152 = vmul.f32 %v1085, %v1150
        %v1153 = vadd.f32 %v1147, %v1151
        %v1154 = vadd.f32 %v1148, %v1152
        %s1155 = sld [smem:[#allocation3 + $0x3a]]
        %v1156 = vstv %s1155
        %v1157 = vmul.f32 %v1102, %v1156
        %v1158 = vmul.f32 %v1108, %v1156
        %v1159 = vadd.f32 %v1153, %v1157
        %v1160 = vadd.f32 %v1154, %v1158
        %v1161 = vadd.f32 %v1081, %v1159
        %v1162 = vadd.f32 %v1082, %v1160
        %v1163 = vld [vmem:[%s747] sm:$0xff]
        %v1164 = vld [vmem:[%s747 + $0x8] sm:$0xff]
        %v1165 = vld [vmem:[%s774 + $0x7] sm:$0x1]
        %v1166 = vmul.f32 %v1165, %v925
        %v1167 = vld [vmem:[%s801] sm:$0x1]
        %v1168 = vmul.f32 %v1167, %v928
        %v1171 = vrot.slane %v1163, 7
        %v1172 = vrot.slane %v1164, 7
        %v1173 = vsel %vm932, %v1171, %v1172
        %v1176 = vsel %vm932, %v1166, %v1171
        %v1177 = vrot.slane %v1163, 1
        %v1178 = vrot.slane %v1164, 1
        %v1179 = vsel %vm939, %v1177, %v1178
        %v1183 = vrot.slane %v1168, 1
        %v1185 = vsel %vm939, %v1178, %v1183
        %s1186 = sld [smem:[#allocation3 + $0x3]]
        %v1187 = vstv %s1186
        %v1188 = vmul.f32 %v1176, %v1187
        %v1189 = vmul.f32 %v1173, %v1187
        %s1190 = sld [smem:[#allocation3 + $0x18]]
        %v1191 = vstv %s1190
        %v1192 = vmul.f32 %v1163, %v1191
        %v1193 = vmul.f32 %v1164, %v1191
        %v1194 = vadd.f32 %v1188, %v1192
        %v1195 = vadd.f32 %v1189, %v1193
        %s1196 = sld [smem:[#allocation3 + $0x2d]]
        %v1197 = vstv %s1196
        %v1198 = vmul.f32 %v1179, %v1197
        %v1199 = vmul.f32 %v1185, %v1197
        %v1200 = vadd.f32 %v1194, %v1198
        %v1201 = vadd.f32 %v1195, %v1199
        %v1202 = vadd.f32 %v1125, %v1200
        %v1203 = vadd.f32 %v1126, %v1201
        %s1204 = sld [smem:[#allocation3 + $0xa]]
        %v1205 = vstv %s1204
        %v1206 = vmul.f32 %v1176, %v1205
        %v1207 = vmul.f32 %v1173, %v1205
        %s1208 = sld [smem:[#allocation3 + $0x1f]]
        %v1209 = vstv %s1208
        %v1210 = vmul.f32 %v1163, %v1209
        %v1211 = vmul.f32 %v1164, %v1209
        %v1212 = vadd.f32 %v1206, %v1210
        %v1213 = vadd.f32 %v1207, %v1211
        %s1214 = sld [smem:[#allocation3 + $0x34]]
        %v1215 = vstv %s1214
        %v1216 = vmul.f32 %v1179, %v1215
        %v1217 = vmul.f32 %v1185, %v1215
        %v1218 = vadd.f32 %v1212, %v1216
        %v1219 = vadd.f32 %v1213, %v1217
        %v1220 = vadd.f32 %v1143, %v1218
        %v1221 = vadd.f32 %v1144, %v1219
        %s1222 = sld [smem:[#allocation3 + $0x11]]
        %v1223 = vstv %s1222
        %v1224 = vmul.f32 %v1176, %v1223
        %v1225 = vmul.f32 %v1173, %v1223
        %s1226 = sld [smem:[#allocation3 + $0x26]]
        %v1227 = vstv %s1226
        %v1228 = vmul.f32 %v1163, %v1227
        %v1229 = vmul.f32 %v1164, %v1227
        %v1230 = vadd.f32 %v1224, %v1228
        %v1231 = vadd.f32 %v1225, %v1229
        %s1232 = sld [smem:[#allocation3 + $0x3b]]
        %v1233 = vstv %s1232
        %v1234 = vmul.f32 %v1179, %v1233
        %v1235 = vmul.f32 %v1185, %v1233
        %v1236 = vadd.f32 %v1230, %v1234
        %v1237 = vadd.f32 %v1231, %v1235
        %v1238 = vadd.f32 %v1161, %v1236
        %v1239 = vadd.f32 %v1162, %v1237
        %s1240 = scalar_lea.vmem %s747, 16 [#allocation8]
        %v1241 = vld [vmem:[%s1240] sm:$0xff]
        %v1242 = vld [vmem:[%s1240 + $0x8] sm:$0xff]
        %s1243 = scalar_lea.vmem %s774, 8 [#allocation13]
        %v1244 = vld [vmem:[%s1243 + $0x7] sm:$0x1]
        %v1245 = vmul.f32 %v1244, %v925
        %s1246 = scalar_lea.vmem %s801, 8 [#allocation17]
        %v1247 = vld [vmem:[%s1246] sm:$0x1]
        %v1248 = vmul.f32 %v1247, %v928
        %v1251 = vrot.slane %v1241, 7
        %v1252 = vrot.slane %v1242, 7
        %v1253 = vsel %vm932, %v1251, %v1252
        %v1256 = vsel %vm932, %v1245, %v1251
        %v1257 = vrot.slane %v1241, 1
        %v1258 = vrot.slane %v1242, 1
        %v1259 = vsel %vm939, %v1257, %v1258
        %v1263 = vrot.slane %v1248, 1
        %v1265 = vsel %vm939, %v1258, %v1263
        %s1266 = sld [smem:[#allocation3 + $0x4]]
        %v1267 = vstv %s1266
        %v1268 = vmul.f32 %v1256, %v1267
        %v1269 = vmul.f32 %v1253, %v1267
        %s1270 = sld [smem:[#allocation3 + $0x19]]
        %v1271 = vstv %s1270
        %v1272 = vmul.f32 %v1241, %v1271
        %v1273 = vmul.f32 %v1242, %v1271
        %v1274 = vadd.f32 %v1268, %v1272
        %v1275 = vadd.f32 %v1269, %v1273
        %s1276 = sld [smem:[#allocation3 + $0x2e]]
        %v1277 = vstv %s1276
        %v1278 = vmul.f32 %v1259, %v1277
        %v1279 = vmul.f32 %v1265, %v1277
        %v1280 = vadd.f32 %v1274, %v1278
        %v1281 = vadd.f32 %v1275, %v1279
        %v1282 = vadd.f32 %v1202, %v1280
        %v1283 = vadd.f32 %v1203, %v1281
        %s1284 = sld [smem:[#allocation3 + $0xb]]
        %v1285 = vstv %s1284
        %v1286 = vmul.f32 %v1256, %v1285
        %v1287 = vmul.f32 %v1253, %v1285
        %s1288 = sld [smem:[#allocation3 + $0x20]]
        %v1289 = vstv %s1288
        %v1290 = vmul.f32 %v1241, %v1289
        %v1291 = vmul.f32 %v1242, %v1289
        %v1292 = vadd.f32 %v1286, %v1290
        %v1293 = vadd.f32 %v1287, %v1291
        %s1294 = sld [smem:[#allocation3 + $0x35]]
        %v1295 = vstv %s1294
        %v1296 = vmul.f32 %v1259, %v1295
        %v1297 = vmul.f32 %v1265, %v1295
        %v1298 = vadd.f32 %v1292, %v1296
        %v1299 = vadd.f32 %v1293, %v1297
        %v1300 = vadd.f32 %v1220, %v1298
        %v1301 = vadd.f32 %v1221, %v1299
        %s1302 = sld [smem:[#allocation3 + $0x12]]
        %v1303 = vstv %s1302
        %v1304 = vmul.f32 %v1256, %v1303
        %v1305 = vmul.f32 %v1253, %v1303
        %s1306 = sld [smem:[#allocation3 + $0x27]]
        %v1307 = vstv %s1306
        %v1308 = vmul.f32 %v1241, %v1307
        %v1309 = vmul.f32 %v1242, %v1307
        %v1310 = vadd.f32 %v1304, %v1308
        %v1311 = vadd.f32 %v1305, %v1309
        %s1312 = sld [smem:[#allocation3 + $0x3c]]
        %v1313 = vstv %s1312
        %v1314 = vmul.f32 %v1259, %v1313
        %v1315 = vmul.f32 %v1265, %v1313
        %v1316 = vadd.f32 %v1310, %v1314
        %v1317 = vadd.f32 %v1311, %v1315
        %v1318 = vadd.f32 %v1238, %v1316
        %v1319 = vadd.f32 %v1239, %v1317
        %s1320 = scalar_lea.vmem %s747, 32 [#allocation8]
        %v1321 = vld [vmem:[%s1320] sm:$0xff]
        %v1322 = vld [vmem:[%s1320 + $0x8] sm:$0xff]
        %s1323 = scalar_lea.vmem %s774, 16 [#allocation13]
        %v1324 = vld [vmem:[%s1323 + $0x7] sm:$0x1]
        %v1325 = vmul.f32 %v1324, %v925
        %s1326 = scalar_lea.vmem %s801, 16 [#allocation17]
        %v1327 = vld [vmem:[%s1326] sm:$0x1]
        %v1328 = vmul.f32 %v1327, %v928
        %v1331 = vrot.slane %v1321, 7
        %v1332 = vrot.slane %v1322, 7
        %v1333 = vsel %vm932, %v1331, %v1332
        %v1336 = vsel %vm932, %v1325, %v1331
        %v1337 = vrot.slane %v1321, 1
        %v1338 = vrot.slane %v1322, 1
        %v1339 = vsel %vm939, %v1337, %v1338
        %v1343 = vrot.slane %v1328, 1
        %v1345 = vsel %vm939, %v1338, %v1343
        %s1346 = sld [smem:[#allocation3 + $0x5]]
        %v1347 = vstv %s1346
        %v1348 = vmul.f32 %v1336, %v1347
        %v1349 = vmul.f32 %v1333, %v1347
        %s1350 = sld [smem:[#allocation3 + $0x1a]]
        %v1351 = vstv %s1350
        %v1352 = vmul.f32 %v1321, %v1351
        %v1353 = vmul.f32 %v1322, %v1351
        %v1354 = vadd.f32 %v1348, %v1352
        %v1355 = vadd.f32 %v1349, %v1353
        %s1356 = sld [smem:[#allocation3 + $0x2f]]
        %v1357 = vstv %s1356
        %v1358 = vmul.f32 %v1339, %v1357
        %v1359 = vmul.f32 %v1345, %v1357
        %v1360 = vadd.f32 %v1354, %v1358
        %v1361 = vadd.f32 %v1355, %v1359
        %v1362 = vadd.f32 %v1282, %v1360
        %v1363 = vadd.f32 %v1283, %v1361
        %s1364 = sld [smem:[#allocation3 + $0xc]]
        %v1365 = vstv %s1364
        %v1366 = vmul.f32 %v1336, %v1365
        %v1367 = vmul.f32 %v1333, %v1365
        %s1368 = sld [smem:[#allocation3 + $0x21]]
        %v1369 = vstv %s1368
        %v1370 = vmul.f32 %v1321, %v1369
        %v1371 = vmul.f32 %v1322, %v1369
        %v1372 = vadd.f32 %v1366, %v1370
        %v1373 = vadd.f32 %v1367, %v1371
        %s1374 = sld [smem:[#allocation3 + $0x36]]
        %v1375 = vstv %s1374
        %v1376 = vmul.f32 %v1339, %v1375
        %v1377 = vmul.f32 %v1345, %v1375
        %v1378 = vadd.f32 %v1372, %v1376
        %v1379 = vadd.f32 %v1373, %v1377
        %v1380 = vadd.f32 %v1300, %v1378
        %v1381 = vadd.f32 %v1301, %v1379
        %s1382 = sld [smem:[#allocation3 + $0x13]]
        %v1383 = vstv %s1382
        %v1384 = vmul.f32 %v1336, %v1383
        %v1385 = vmul.f32 %v1333, %v1383
        %s1386 = sld [smem:[#allocation3 + $0x28]]
        %v1387 = vstv %s1386
        %v1388 = vmul.f32 %v1321, %v1387
        %v1389 = vmul.f32 %v1322, %v1387
        %v1390 = vadd.f32 %v1384, %v1388
        %v1391 = vadd.f32 %v1385, %v1389
        %s1392 = sld [smem:[#allocation3 + $0x3d]]
        %v1393 = vstv %s1392
        %v1394 = vmul.f32 %v1339, %v1393
        %v1395 = vmul.f32 %v1345, %v1393
        %v1396 = vadd.f32 %v1390, %v1394
        %v1397 = vadd.f32 %v1391, %v1395
        %v1398 = vadd.f32 %v1318, %v1396
        %v1399 = vadd.f32 %v1319, %v1397
        %v1400 = vld [vmem:[%s756] sm:$0xff]
        %v1401 = vld [vmem:[%s756 + $0x8] sm:$0xff]
        %v1402 = vld [vmem:[%s783 + $0x7] sm:$0x1]
        %v1403 = vmul.f32 %v1402, %v925
        %v1404 = vld [vmem:[%s810] sm:$0x1]
        %v1405 = vmul.f32 %v1404, %v928
        %v1408 = vrot.slane %v1400, 7
        %v1409 = vrot.slane %v1401, 7
        %v1410 = vsel %vm932, %v1408, %v1409
        %v1413 = vsel %vm932, %v1403, %v1408
        %v1414 = vrot.slane %v1400, 1
        %v1415 = vrot.slane %v1401, 1
        %v1416 = vsel %vm939, %v1414, %v1415
        %v1420 = vrot.slane %v1405, 1
        %v1422 = vsel %vm939, %v1415, %v1420
        %s1423 = sld [smem:[#allocation3 + $0x6]]
        %v1424 = vstv %s1423
        %v1425 = vmul.f32 %v1413, %v1424
        %v1426 = vmul.f32 %v1410, %v1424
        %s1427 = sld [smem:[#allocation3 + $0x1b]]
        %v1428 = vstv %s1427
        %v1429 = vmul.f32 %v1400, %v1428
        %v1430 = vmul.f32 %v1401, %v1428
        %v1431 = vadd.f32 %v1425, %v1429
        %v1432 = vadd.f32 %v1426, %v1430
        %s1433 = sld [smem:[#allocation3 + $0x30]]
        %v1434 = vstv %s1433
        %v1435 = vmul.f32 %v1416, %v1434
        %v1436 = vmul.f32 %v1422, %v1434
        %v1437 = vadd.f32 %v1431, %v1435
        %v1438 = vadd.f32 %v1432, %v1436
        %v1439 = vadd.f32 %v1362, %v1437
        %v1440 = vadd.f32 %v1363, %v1438
        %s1441 = sld [smem:[#allocation3 + $0xd]]
        %v1442 = vstv %s1441
        %v1443 = vmul.f32 %v1413, %v1442
        %v1444 = vmul.f32 %v1410, %v1442
        %s1445 = sld [smem:[#allocation3 + $0x22]]
        %v1446 = vstv %s1445
        %v1447 = vmul.f32 %v1400, %v1446
        %v1448 = vmul.f32 %v1401, %v1446
        %v1449 = vadd.f32 %v1443, %v1447
        %v1450 = vadd.f32 %v1444, %v1448
        %s1451 = sld [smem:[#allocation3 + $0x37]]
        %v1452 = vstv %s1451
        %v1453 = vmul.f32 %v1416, %v1452
        %v1454 = vmul.f32 %v1422, %v1452
        %v1455 = vadd.f32 %v1449, %v1453
        %v1456 = vadd.f32 %v1450, %v1454
        %v1457 = vadd.f32 %v1380, %v1455
        %v1458 = vadd.f32 %v1381, %v1456
        %s1459 = sld [smem:[#allocation3 + $0x14]]
        %v1460 = vstv %s1459
        %v1461 = vmul.f32 %v1413, %v1460
        %v1462 = vmul.f32 %v1410, %v1460
        %s1463 = sld [smem:[#allocation3 + $0x29]]
        %v1464 = vstv %s1463
        %v1465 = vmul.f32 %v1400, %v1464
        %v1466 = vmul.f32 %v1401, %v1464
        %v1467 = vadd.f32 %v1461, %v1465
        %v1468 = vadd.f32 %v1462, %v1466
        %s1469 = sld [smem:[#allocation3 + $0x3e]]
        %v1470 = vstv %s1469
        %v1471 = vmul.f32 %v1416, %v1470
        %v1472 = vmul.f32 %v1422, %v1470
        %v1473 = vadd.f32 %v1467, %v1471
        %v1474 = vadd.f32 %v1468, %v1472
        %v1475 = vadd.f32 %v1398, %v1473
        %v1476 = vadd.f32 %v1399, %v1474
        %1479 = vrot.lane.b32.xlu0 %v1439, 1
        %v1480 = vpop.permute.xlu0 %1479
        %1481 = vrot.lane.b32.xlu0 %v1440, 1
        %v1482 = vpop.permute.xlu0 %1481
        %vm1485 = vcmask 7168
        %v1486 = vsel %vm1485, 0.0, %v1480
        %v1487 = vsel %vm1485, 0.0, %v1482
        %v1488 = vadd.f32 %v1486, %v1457
        %v1489 = vadd.f32 %v1487, %v1458
        %1492 = vrot.lane.b32.xlu0 %v1475, 127
        %v1493 = vpop.permute.xlu0 %1492
        %1494 = vrot.lane.b32.xlu0 %v1476, 127
        %v1495 = vpop.permute.xlu0 %1494
        %vm1498 = vcmask 252928
        %v1499 = vsel %vm1498, %v1493, 0.0
        %v1500 = vsel %vm1498, %v1495, 0.0
        %v1501 = vadd.f32 %v1488, %v1499
        %v1502 = vadd.f32 %v1489, %v1500
        %s1503 = sld [smem:[#allocation2]]
        %v1504 = vstv %s1503
        %v1505 = vadd.f32 %v1501, %v1504
        %v1506 = vadd.f32 %v1502, %v1504
        %v1507 = vxor.u32 %v1505, 2147483648
        %v1508 = vxor.u32 %v1506, 2147483648
        %v1509 = vmul.f32 %v1507, 1.442695
        %v1510 = vpow.pop %v1509
        %v1511 = vmul.f32 %v1508, 1.442695
        %v1512 = vpow.pop %v1511
        %v1513 = vadd.f32 %v1510, 1.0
        %v1514 = vadd.f32 %v1512, 1.0
        %v1515 = vrcp.pop %v1513
        %v1516 = vmul.f32 1.0, %v1515
        %v1517 = vrcp.pop %v1514
        %v1518 = vmul.f32 1.0, %v1517
        %v1519 = vmul.f32 %v1400, %v1516
        %v1520 = vmul.f32 %v1401, %v1518
        %v1521 = vsub.f32 1.0, %v1519
        %v1522 = vsub.f32 1.0, %v1520
        %v1523 = vmul.f32 %v1519, %v1163
        %v1524 = vmul.f32 %v1520, %v1164
        %v1525 = vmul.f32 %v1521, %v922
        %v1526 = vmul.f32 %v1522, %v923
        %v1527 = vadd.f32 %v1523, %v1525
        %v1528 = vadd.f32 %v1524, %v1526
        %vm1529 = vcmask 261120
        %1530 = vst.msk [vmem:[%s889] sm:$0xff] %vm1529, %v1527
        %1531 = vst.msk [vmem:[%s889 + $0x8] sm:$0xff] %vm1529, %v1528
        %v1532 = vld [vmem:[%s1240] sm:$0xff]
        %v1533 = vld [vmem:[%s1240 + $0x8] sm:$0xff]
        %v1534 = vmul.f32 %v1519, %v1532
        %v1535 = vmul.f32 %v1520, %v1533
        %v1536 = vld [vmem:[%s1003] sm:$0xff]
        %v1537 = vld [vmem:[%s1003 + $0x8] sm:$0xff]
        %v1538 = vmul.f32 %v1521, %v1536
        %v1539 = vmul.f32 %v1522, %v1537
        %v1540 = vadd.f32 %v1534, %v1538
        %v1541 = vadd.f32 %v1535, %v1539
        %s1542 = scalar_lea.vmem %s889, 16 [#allocation20]
        %1543 = vst.msk [vmem:[%s1542] sm:$0xff] %vm1529, %v1540
        %1544 = vst.msk [vmem:[%s1542 + $0x8] sm:$0xff] %vm1529, %v1541
        %v1545 = vld [vmem:[%s1320] sm:$0xff]
        %v1546 = vld [vmem:[%s1320 + $0x8] sm:$0xff]
        %v1547 = vmul.f32 %v1519, %v1545
        %v1548 = vmul.f32 %v1520, %v1546
        %v1549 = vld [vmem:[%s1083] sm:$0xff]
        %v1550 = vld [vmem:[%s1083 + $0x8] sm:$0xff]
        %v1551 = vmul.f32 %v1521, %v1549
        %v1552 = vmul.f32 %v1522, %v1550
        %v1553 = vadd.f32 %v1547, %v1551
        %v1554 = vadd.f32 %v1548, %v1552
        %s1555 = scalar_lea.vmem %s889, 32 [#allocation20]
        %1556 = vst.msk [vmem:[%s1555] sm:$0xff] %vm1529, %v1553
        %1557 = vst.msk [vmem:[%s1555 + $0x8] sm:$0xff] %vm1529, %v1554
        %s1558 = sand.u32 %s406, 1
        %s1559 = scalar_lea.sflag [#allocation5], %s1558
        %s1560 = sand.u32 %s406, 1
        %s1561 = smul.addr %s1560, 48
        %s1562 = scalar_lea.vmem [#allocation20], %s1561
        // Predicated region
        $region105: #{tpu_custom_call.1} parent=63 // pred_check
          %p1563 = pneg %p416
        $region106: #{tpu_custom_call.1} parent=63 // pred_check_branch
          %1565 = sbr.rel (%p1563) target = $region108
        $region107: #{tpu_custom_call.1} parent=63 // pred_region
          #allocation26 [shape = 'u32[6]{0}', space=smem, size = 0x18, scoped, tag = 'DMA stride descriptor']
          %s1566 = smul.u32 2, %s47
          %s1568 = ssub.s32 768, 768
          %1569 = vsyncadd %s1559, %s1568
          %s1570 = smul.addr %s46, 12
          %s1571 = sadd.s32 %s1566, %s1570
          %s1572 = smul.addr %s1571, 128
          %s1573 = scalar_lea.hbm %s11, %s1572
          %s1575 = sshll.u32 1, 14
          %s1576 = sxor.u32 4294967295, %s1575
          %s1579 = sshll.u32 7, 18
          %s1580 = sxor.u32 4294967295, %s1579
          %s1581 = sand.u32 0, %s1580
          %s1583 = sor.u32 %s1581, 0
          %s1585 = sshll.u32 3, 24
          %s1586 = sxor.u32 4294967295, %s1585
          %s1587 = sand.u32 %s1583, %s1586
          %s1589 = sor.u32 %s1587, 0
          %s1590 = sshll.u32 %s1562, 4
          %s1591 = int_to_ptr.vmem [resolvable:$true] %s1590
          %1597 = sst [smem:[#allocation26]] 256
          %s1598 = scalar_lea.smem [#allocation26], 1
          %1599 = sst [smem:[%s1598]] 512
          %s1600 = scalar_lea.smem [#allocation26], 2
          %1601 = sst [smem:[%s1600]] 2
          %s1602 = scalar_lea.smem [#allocation26], 3
          %1603 = sst [smem:[%s1602]] 128
          %s1604 = scalar_lea.smem [#allocation26], 4
          %1605 = sst [smem:[%s1604]] 128
          %s1606 = scalar_lea.smem [#allocation26], 5
          %1607 = sst [smem:[%s1606]] 8
          %1609 = dma.general %s1591, 768, %s1573, %s1559, [#allocation25], [#allocation26], %s1589, 0
        $region108: #{tpu_custom_call.1} parent=63 // pred_fallthru
          _
      $region64: #{tpu_custom_call.1} parent=5 // pred_fallthru
        _
      %p1610 = scmp.le.s32.totalorder 2, %s37
      // Predicated region
      $region109: #{tpu_custom_call.1} parent=5 // pred_check
        %p1611 = pneg %p1610
      $region110: #{tpu_custom_call.1} parent=5 // pred_check_branch
        %1613 = sbr.rel (%p1611) target = $region112
      $region111: #{tpu_custom_call.1} parent=5 // pred_region
        %s1614 = ssub.s32 %s37, 2
        // Predicated region
        $region113: #{tpu_custom_call.1} parent=111 // pred_check
          %p1615 = pneg %p422
        $region114: #{tpu_custom_call.1} parent=111 // pred_check_branch
          %1617 = sbr.rel (%p1615) target = $region116
        $region115: #{tpu_custom_call.1} parent=111 // pred_region
          %s1618 = sand.u32 %s407, 1
          %s1619 = scalar_lea.sflag [#allocation5], %s1618
          %s1620 = sand.u32 %s407, 1
          %s1621 = smul.addr %s1620, 48
          %s1622 = scalar_lea.vmem [#allocation20], %s1621
          %1623 = dma.done %s1619, 768
        $region116: #{tpu_custom_call.1} parent=111 // pred_fallthru
          _
      $region112: #{tpu_custom_call.1} parent=5 // pred_fallthru
        _
    $region6: #{tpu_custom_call.1} parent=1 // loop_footer
      %s41 = sadd.s32 1, %s37
    $region7: #{tpu_custom_call.1} parent=1 // loop_footer_branch
      %36 = sbr.rel target = $region3
    $region8: #{tpu_custom_call.1} parent=1 // loop_exit
      _
    %1624 = vsyncpa [#allocation4], 1
    %s1625 = scalar_lea.sflag [#allocation4], 1
    %1626 = vsyncpa %s1625, 1
    %1627 = vsyncpa [#allocation9], 1
    %s1628 = scalar_lea.sflag [#allocation9], 1
    %1629 = vsyncpa %s1628, 1
    %1630 = vsyncpa [#allocation12], 1
    %s1631 = scalar_lea.sflag [#allocation12], 1
    %1632 = vsyncpa %s1631, 1
    %1633 = vsyncpa [#allocation15], 1
    %s1634 = scalar_lea.sflag [#allocation15], 1
    %1635 = vsyncpa %s1634, 1
    %1636 = vsyncpa [#allocation18], 1
    %s1637 = scalar_lea.sflag [#allocation18], 1
    %1638 = vsyncpa %s1637, 1
    %1639 = vsyncpa [#allocation5], 1
    %s1640 = scalar_lea.sflag [#allocation5], 1
    %1641 = vsyncpa %s1640, 1
    %1642 = vsyncpa [#allocation6], 1
    %s1643 = scalar_lea.sflag [#allocation6], 1
    %1644 = vsyncpa %s1643, 1

</llo_original>
